<compile_context>
chip_gen: v7x
topology: tpu7x:2x2x1
jax: 0.10.0
libtpu: 0.0.40
codegen_flags: <defaults>
</compile_context>

<pallas_src>
import functools

import jax
import jax.numpy as jnp
from jax import lax
from jax.experimental import pallas as pl
from jax.experimental.pallas import tpu as pltpu

EPS = 1e-5  # nn.GroupNorm default eps


# ----------------------------- in-kernel helpers -----------------------------

def _group_norm_swish(x, gmat, gamma, beta):
    """GroupNorm (affine) + Swish on a single image in (C, H*W) layout (f32).

    gmat is the (C, C) group-averaging matrix (row c averages the channels of c's group),
    so gmat @ x followed by a mean over the spatial axis gives exact group statistics.
    """
    gmean = jnp.mean(jnp.dot(gmat, x, preferred_element_type=jnp.float32),
                     axis=1, keepdims=True)                      # (C, 1) group mean
    xc = x - gmean
    gvar = jnp.mean(jnp.dot(gmat, xc * xc, preferred_element_type=jnp.float32),
                    axis=1, keepdims=True)                       # (C, 1) group variance
    y = xc * lax.rsqrt(gvar + EPS) * gamma + beta
    return y * jax.nn.sigmoid(y)                                 # Swish


def _im2col_3x3(xf, H, W):
    """Build the 3x3 im2col matrix (9*C, H*W) from xf (C, H*W), zero-padded ("SAME").

    Shifting the flattened spatial axis by (dy-1)*W + (dx-1) gives the (dy, dx) tap; row
    over/underflow is handled by the zero pad of the flat axis, and column wrap-around is
    removed by pre-zeroing the source column that would be read across a row boundary.
    """
    C, HW = xf.shape
    col = lax.broadcasted_iota(jnp.int32, (1, HW), 1) % W
    x_for_dx = (
        xf * (col != (W - 1)).astype(xf.dtype),   # dx = 0 taps read source column w-1
        xf,                                       # dx = 1 taps (no wrap possible)
        xf * (col != 0).astype(xf.dtype),         # dx = 2 taps read source column w+1
    )
    P = W + 1                                     # max |flat shift|
    zeros = jnp.zeros((C, P), xf.dtype)
    padded = [jnp.concatenate([zeros, s, zeros], axis=1) for s in x_for_dx]
    taps = []
    for k in range(9):                            # static unroll
        dy, dx = divmod(k, 3)
        start = P + (dy - 1) * W + (dx - 1)
        taps.append(padded[dx][:, start:start + HW])
    return jnp.concatenate(taps, axis=0)          # (9*C, H*W), row = k*C + c


# --------------------------------- kernel ------------------------------------

def fused_resblock_kernel(x_ref, gmat1_ref, gamma1_ref, beta1_ref, w1_ref, b1_ref,
                          gmat2_ref, gamma2_ref, beta2_ref, w2_ref, b2_ref,
                          o_ref, *, H, W, fold_residual):
    x = x_ref[0]                                                   # (Cin, H*W)

    # ---- block 1: GroupNorm -> Swish -> 3x3 conv (single im2col matmul) ----
    s1 = _group_norm_swish(x, gmat1_ref[...], gamma1_ref[...], beta1_ref[...])
    col1 = _im2col_3x3(s1, H, W)                                   # (9*Cin, H*W)
    h = jnp.dot(w1_ref[...], col1, preferred_element_type=jnp.float32) + b1_ref[...]

    # ---- block 2: GroupNorm -> Swish -> 3x3 conv, residual folded in ----
    s2 = _group_norm_swish(h, gmat2_ref[...], gamma2_ref[...], beta2_ref[...])
    col2 = _im2col_3x3(s2, H, W)                                   # (9*Cout, H*W)
    if fold_residual:
        # residual 1x1 conv folded into the same MXU contraction (x along K, wr along weight K)
        col2 = jnp.concatenate([col2, x], axis=0)                  # (9*Cout + Cin, H*W)
        out = jnp.dot(w2_ref[...], col2, preferred_element_type=jnp.float32) + b2_ref[...]
    else:
        out = jnp.dot(w2_ref[...], col2, preferred_element_type=jnp.float32) + b2_ref[...]
        out = out + x                                              # identity residual (Cin == Cout)

    o_ref[0] = out                                                 # (Cout, H*W), lane-dense


# ------------------------------- wrapper --------------------------------------

def group_avg_matrix(C, groups):
    cg = C // groups
    ids = jnp.arange(C) // cg
    return (ids[:, None] == ids[None, :]).astype(jnp.float32) / float(cg)


def uhalf_resnet_block(x_nchw, p, norm_groups):
    """Forward pass of Uhalf_ResnetBlock. Input/output in NCHW (PyTorch convention)."""
    x = x_nchw.astype(jnp.float32)
    N, Cin, H, W = x.shape
    HW = H * W
    Cout = p["w1"].shape[-1]
    has_res_conv = "wr" in p                                        # dim != dim_out

    x_flat = x.reshape(N, Cin, HW)                                  # contiguous -> free reshape

    gmat1 = group_avg_matrix(Cin, norm_groups)
    gmat2 = group_avg_matrix(Cout, norm_groups)

    # Host-side weight packing for the fused im2col matmuls (LHS = weights, RHS = im2col cols).
    w1_mat = p["w1"].reshape(9 * Cin, Cout).T                       # (Cout, 9*Cin)
    if has_res_conv:
        w2_mat = jnp.concatenate([p["w2"].reshape(9 * Cout, Cout).T, p["wr"].T], axis=1)
        b2_tot = (p["b2"] + p["br"]).reshape(Cout, 1)
    else:
        w2_mat = p["w2"].reshape(9 * Cout, Cout).T                  # (Cout, 9*Cout)
        b2_tot = p["b2"].reshape(Cout, 1)
    K2 = w2_mat.shape[1]

    gamma1 = p["gamma1"].reshape(Cin, 1)
    beta1 = p["beta1"].reshape(Cin, 1)
    gamma2 = p["gamma2"].reshape(Cout, 1)
    beta2 = p["beta2"].reshape(Cout, 1)
    b1 = p["b1"].reshape(Cout, 1)

    kernel = functools.partial(fused_resblock_kernel, H=H, W=W, fold_residual=has_res_conv)

    out = pl.pallas_call(
        kernel,
        out_shape=jax.ShapeDtypeStruct((N, Cout, HW), jnp.float32),
        grid_spec=pltpu.PrefetchScalarGridSpec(
            num_scalar_prefetch=0,
            grid=(N,),
            in_specs=[
                pl.BlockSpec((1, Cin, HW), lambda n: (n, 0, 0)),
                pl.BlockSpec((Cin, Cin), lambda n: (0, 0)),
                pl.BlockSpec((Cin, 1), lambda n: (0, 0)),
                pl.BlockSpec((Cin, 1), lambda n: (0, 0)),
                pl.BlockSpec((Cout, 9 * Cin), lambda n: (0, 0)),
                pl.BlockSpec((Cout, 1), lambda n: (0, 0)),
                pl.BlockSpec((Cout, Cout), lambda n: (0, 0)),
                pl.BlockSpec((Cout, 1), lambda n: (0, 0)),
                pl.BlockSpec((Cout, 1), lambda n: (0, 0)),
                pl.BlockSpec((Cout, K2), lambda n: (0, 0)),
                pl.BlockSpec((Cout, 1), lambda n: (0, 0)),
            ],
            out_specs=pl.BlockSpec((1, Cout, HW), lambda n: (n, 0, 0)),
        ),
        compiler_params=pltpu.CompilerParams(dimension_semantics=("parallel",)),
    )(x_flat, gmat1, gamma1, beta1, w1_mat, b1,
      gmat2, gamma2, beta2, w2_mat, b2_tot)

    return out.reshape(N, Cout, H, W)                               # already NCHW


# ------------------------- pure-JAX reference (for check) ---------------------

def _ref_block(x, gamma, beta, w, b, groups):
    N, H, W, C = x.shape
    xg = x.reshape(N, H, W, groups, C // groups)
    mean = xg.mean(axis=(1, 2, 4), keepdims=True)
    var = xg.var(axis=(1, 2, 4), keepdims=True)
    xn = ((xg - mean) / jnp.sqrt(var + EPS)).reshape(N, H, W, C)
    y = xn * gamma.reshape(1, 1, 1, C) + beta.reshape(1, 1, 1, C)
    s = y * jax.nn.sigmoid(y)
    Cout = w.shape[-1]
    wk = w.reshape(3, 3, C, Cout)
    out = jax.lax.conv_general_dilated(
        s, wk, (1, 1), "SAME", dimension_numbers=("NHWC", "HWIO", "NHWC"))
    return out + b.reshape(1, 1, 1, Cout)


def _ref_forward(x_nchw, p, norm_groups):
    x = jnp.transpose(x_nchw, (0, 2, 3, 1)).astype(jnp.float32)
    h = _ref_block(x, p["gamma1"], p["beta1"], p["w1"], p["b1"], norm_groups)
    h = _ref_block(h, p["gamma2"], p["beta2"], p["w2"], p["b2"], norm_groups)
    if "wr" in p:
        res = jnp.einsum("nhwc,co->nhwo", x, p["wr"]) + p["br"].reshape(1, 1, 1, -1)
    else:
        res = x
    return jnp.transpose(h + res, (0, 3, 1, 2))


# ----------------------------------- main --------------------------------------

def make_params(key, dim, dim_out):
    ks = jax.random.split(key, 10)
    p = {
        # block1: GroupNorm(dim) + Conv2d(dim, dim_out, 3, pad=1)
        "gamma1": 1.0 + 0.1 * jax.random.normal(ks[0], (1, dim), jnp.float32),
        "beta1":  0.1 * jax.random.normal(ks[1], (1, dim), jnp.float32),
        "w1":     0.2 * jax.random.normal(ks[2], (9, dim, dim_out), jnp.float32),
        "b1":     0.1 * jax.random.normal(ks[3], (1, dim_out), jnp.float32),
        # block2: GroupNorm(dim_out) + Conv2d(dim_out, dim_out, 3, pad=1)
        "gamma2": 1.0 + 0.1 * jax.random.normal(ks[4], (1, dim_out), jnp.float32),
        "beta2":  0.1 * jax.random.normal(ks[5], (1, dim_out), jnp.float32),
        "w2":     0.2 * jax.random.normal(ks[6], (9, dim_out, dim_out), jnp.float32),
        "b2":     0.1 * jax.random.normal(ks[7], (1, dim_out), jnp.float32),
    }
    # residual path: Conv2d(dim, dim_out, 1) if dim != dim_out else Identity
    if dim != dim_out:
        p["wr"] = 0.2 * jax.random.normal(ks[8], (dim, dim_out), jnp.float32)
        p["br"] = 0.1 * jax.random.normal(ks[9], (1, dim_out), jnp.float32)
    return p


if __name__ == "__main__":
    key = jax.random.PRNGKey(0)
    kx1, kp1, kx2, kp2 = jax.random.split(key, 4)

    N, H, W, groups = 2, 16, 16, 2

    # Case 1: dim != dim_out -> residual 1x1 conv folded into the second conv's matmul.
    dim, dim_out = 4, 8
    x1 = jax.random.normal(kx1, (N, dim, H, W), jnp.float32)
    p1 = make_params(kp1, dim, dim_out)
    out1 = jax.block_until_ready(uhalf_resnet_block(x1, p1, groups))
    ref1 = _ref_forward(x1, p1, groups)
    ok1 = bool(jnp.allclose(out1, ref1, atol=1e-4, rtol=1e-4))

    # Case 2: dim == dim_out -> identity residual (no identity matmul).
    dim2 = 8
    x2 = jax.random.normal(kx2, (N, dim2, H, W), jnp.float32)
    p2 = make_params(kp2, dim2, dim2)
    out2 = jax.block_until_ready(uhalf_resnet_block(x2, p2, groups))
    ref2 = _ref_forward(x2, p2, groups)
    ok2 = bool(jnp.allclose(out2, ref2, atol=1e-4, rtol=1e-4))

    if not (ok1 and ok2):
        err1 = float(jnp.max(jnp.abs(out1 - ref1)))
        err2 = float(jnp.max(jnp.abs(out2 - ref2)))
        raise SystemExit(f"mismatch vs JAX reference: max abs errs = {err1}, {err2}")
    print("KERNEL_OK")
</pallas_src>

<mosaic_0001>
module attributes {stable_mosaic.version = 11 : i64} {
  func.func @fused_resblock_kernel(%arg0: i32, %arg1: memref<1x4x256xf32, #tpu.memory_space<vmem>>, %arg2: memref<4x4xf32, #tpu.memory_space<vmem>>, %arg3: memref<4x1xf32, #tpu.memory_space<vmem>>, %arg4: memref<4x1xf32, #tpu.memory_space<vmem>>, %arg5: memref<8x36xf32, #tpu.memory_space<vmem>>, %arg6: memref<8x1xf32, #tpu.memory_space<vmem>>, %arg7: memref<8x8xf32, #tpu.memory_space<vmem>>, %arg8: memref<8x1xf32, #tpu.memory_space<vmem>>, %arg9: memref<8x1xf32, #tpu.memory_space<vmem>>, %arg10: memref<8x76xf32, #tpu.memory_space<vmem>>, %arg11: memref<8x1xf32, #tpu.memory_space<vmem>>, %arg12: memref<1x8x256xf32, #tpu.memory_space<vmem>>) attributes {dimension_semantics = [#tpu.dimension_semantics<parallel>], iteration_bounds = array<i64: 2>, scalar_prefetch = 0 : i64, scratch_operands = 0 : i64, tpu.core_type = #tpu.core_type<tc>, window_params = [{transform_indices = @transform_0, window_bounds = array<i64: 1, 4, 256>}, {pipeline_mode = #tpu.pipeline_mode<synchronous>, transform_indices = @transform_1, window_bounds = array<i64: 4, 4>}, {pipeline_mode = #tpu.pipeline_mode<synchronous>, transform_indices = @transform_2, window_bounds = array<i64: 4, 1>}, {pipeline_mode = #tpu.pipeline_mode<synchronous>, transform_indices = @transform_3, window_bounds = array<i64: 4, 1>}, {pipeline_mode = #tpu.pipeline_mode<synchronous>, transform_indices = @transform_4, window_bounds = array<i64: 8, 36>}, {pipeline_mode = #tpu.pipeline_mode<synchronous>, transform_indices = @transform_5, window_bounds = array<i64: 8, 1>}, {pipeline_mode = #tpu.pipeline_mode<synchronous>, transform_indices = @transform_6, window_bounds = array<i64: 8, 8>}, {pipeline_mode = #tpu.pipeline_mode<synchronous>, transform_indices = @transform_7, window_bounds = array<i64: 8, 1>}, {pipeline_mode = #tpu.pipeline_mode<synchronous>, transform_indices = @transform_8, window_bounds = array<i64: 8, 1>}, {pipeline_mode = #tpu.pipeline_mode<synchronous>, transform_indices = @transform_9, window_bounds = array<i64: 8, 76>}, {pipeline_mode = #tpu.pipeline_mode<synchronous>, transform_indices = @transform_10, window_bounds = array<i64: 8, 1>}, {transform_indices = @transform_11, window_bounds = array<i64: 1, 8, 256>}]} {
    %c0 = arith.constant 0 : index
    %c0_0 = arith.constant 0 : index
    %c0_1 = arith.constant 0 : index
    %0 = vector.load %arg1[%c0, %c0_0, %c0_1] : memref<1x4x256xf32, #tpu.memory_space<vmem>>, vector<1x4x256xf32>
    %1 = vector.shape_cast %0 : vector<1x4x256xf32> to vector<4x256xf32>
    %c0_2 = arith.constant 0 : index
    %c0_3 = arith.constant 0 : index
    %2 = vector.load %arg2[%c0_2, %c0_3] : memref<4x4xf32, #tpu.memory_space<vmem>>, vector<4x4xf32>
    %c0_4 = arith.constant 0 : index
    %c0_5 = arith.constant 0 : index
    %3 = vector.load %arg3[%c0_4, %c0_5] : memref<4x1xf32, #tpu.memory_space<vmem>>, vector<4x1xf32>
    %c0_6 = arith.constant 0 : index
    %c0_7 = arith.constant 0 : index
    %4 = vector.load %arg4[%c0_6, %c0_7] : memref<4x1xf32, #tpu.memory_space<vmem>>, vector<4x1xf32>
    %cst = arith.constant dense<0.000000e+00> : vector<4x256xf32>
    %5 = tpu.matmul %2, %1, %cst {dimension_numbers = #tpu.dot_dimension_numbers<[1], [0], [0], [1], [0, 0, 1, 1], [], []>} : vector<4x4xf32>, vector<4x256xf32>, vector<4x256xf32> -> vector<4x256xf32>
    %cst_8 = arith.constant dense<0.000000e+00> : vector<4xf32>
    %6 = vector.multi_reduction <add>, %5, %cst_8 [1] : vector<4x256xf32> to vector<4xf32>
    %7 = vector.shape_cast %6 : vector<4xf32> to vector<4x1xf32>
    %cst_9 = arith.constant 2.560000e+02 : f32
    %8 = vector.broadcast %cst_9 : f32 to vector<4x1xf32>
    %9 = arith.divf %7, %8 : vector<4x1xf32>
    %10 = vector.broadcast %9 : vector<4x1xf32> to vector<4x256xf32>
    %11 = arith.subf %1, %10 : vector<4x256xf32>
    %12 = arith.mulf %11, %11 : vector<4x256xf32>
    %cst_10 = arith.constant dense<0.000000e+00> : vector<4x256xf32>
    %13 = tpu.matmul %2, %12, %cst_10 {dimension_numbers = #tpu.dot_dimension_numbers<[1], [0], [0], [1], [0, 0, 1, 1], [], []>} : vector<4x4xf32>, vector<4x256xf32>, vector<4x256xf32> -> vector<4x256xf32>
    %cst_11 = arith.constant dense<0.000000e+00> : vector<4xf32>
    %14 = vector.multi_reduction <add>, %13, %cst_11 [1] : vector<4x256xf32> to vector<4xf32>
    %15 = vector.shape_cast %14 : vector<4xf32> to vector<4x1xf32>
    %cst_12 = arith.constant 2.560000e+02 : f32
    %16 = vector.broadcast %cst_12 : f32 to vector<4x1xf32>
    %17 = arith.divf %15, %16 : vector<4x1xf32>
    %cst_13 = arith.constant 9.99999974E-6 : f32
    %18 = vector.broadcast %cst_13 : f32 to vector<4x1xf32>
    %19 = arith.addf %17, %18 : vector<4x1xf32>
    %20 = math.rsqrt %19 : vector<4x1xf32>
    %21 = vector.broadcast %20 : vector<4x1xf32> to vector<4x256xf32>
    %22 = arith.mulf %11, %21 : vector<4x256xf32>
    %23 = vector.broadcast %3 : vector<4x1xf32> to vector<4x256xf32>
    %24 = arith.mulf %22, %23 : vector<4x256xf32>
    %25 = vector.broadcast %4 : vector<4x1xf32> to vector<4x256xf32>
    %26 = arith.addf %24, %25 : vector<4x256xf32>
    %27 = arith.negf %26 : vector<4x256xf32>
    %28 = math.exp %27 : vector<4x256xf32>
    %cst_14 = arith.constant 1.000000e+00 : f32
    %29 = vector.broadcast %cst_14 : f32 to vector<4x256xf32>
    %30 = arith.addf %29, %28 : vector<4x256xf32>
    %31 = arith.divf %29, %30 : vector<4x256xf32>
    %32 = arith.mulf %26, %31 : vector<4x256xf32>
    %33 = tpu.iota {dimensions = array<i32: 1>} : vector<1x256xi32>
    %c16_i32 = arith.constant 16 : i32
    %c0_i32 = arith.constant 0 : i32
    %34 = arith.cmpi eq, %c16_i32, %c0_i32 : i32
    %c1_i32 = arith.constant 1 : i32
    %35 = arith.select %34, %c1_i32, %c16_i32 : i32
    %36 = vector.broadcast %35 : i32 to vector<1x256xi32>
    %37 = arith.remsi %33, %36 : vector<1x256xi32>
    %c0_i32_15 = arith.constant 0 : i32
    %38 = vector.broadcast %c0_i32_15 : i32 to vector<1x256xi32>
    %39 = arith.cmpi ne, %37, %38 : vector<1x256xi32>
    %c0_i32_16 = arith.constant 0 : i32
    %40 = vector.broadcast %c0_i32_16 : i32 to vector<1x256xi32>
    %41 = arith.cmpi slt, %37, %40 : vector<1x256xi32>
    %c0_i32_17 = arith.constant 0 : i32
    %42 = arith.cmpi slt, %35, %c0_i32_17 : i32
    %43 = vector.broadcast %42 : i1 to vector<1x256xi1>
    %44 = vector.broadcast %43 : vector<1x256xi1> to vector<1x256xi1>
    %45 = arith.xori %41, %44 : vector<1x256xi1>
    %46 = arith.andi %45, %39 : vector<1x256xi1>
    %47 = vector.broadcast %35 : i32 to vector<1x256xi32>
    %48 = arith.addi %37, %47 : vector<1x256xi32>
    %49 = arith.select %46, %48, %37 : vector<1x256xi1>, vector<1x256xi32>
    %c15_i32 = arith.constant 15 : i32
    %50 = vector.broadcast %c15_i32 : i32 to vector<1x256xi32>
    %51 = arith.cmpi ne, %49, %50 : vector<1x256xi32>
    %52 = arith.extui %51 : vector<1x256xi1> to vector<1x256xi32>
    %53 = arith.sitofp %52 : vector<1x256xi32> to vector<1x256xf32>
    %54 = vector.broadcast %53 : vector<1x256xf32> to vector<4x256xf32>
    %55 = arith.mulf %32, %54 : vector<4x256xf32>
    %c0_i32_18 = arith.constant 0 : i32
    %56 = vector.broadcast %c0_i32_18 : i32 to vector<1x256xi32>
    %57 = arith.cmpi ne, %49, %56 : vector<1x256xi32>
    %58 = arith.extui %57 : vector<1x256xi1> to vector<1x256xi32>
    %59 = arith.sitofp %58 : vector<1x256xi32> to vector<1x256xf32>
    %60 = vector.broadcast %59 : vector<1x256xf32> to vector<4x256xf32>
    %61 = arith.mulf %32, %60 : vector<4x256xf32>
    %cst_19 = arith.constant 0.000000e+00 : f32
    %62 = vector.broadcast %cst_19 : f32 to vector<4x17xf32>
    %63 = tpu.concatenate %62, %55, %62 in 1 : vector<4x17xf32>, vector<4x256xf32>, vector<4x17xf32> -> vector<4x290xf32>
    %64 = tpu.concatenate %62, %32, %62 in 1 : vector<4x17xf32>, vector<4x256xf32>, vector<4x17xf32> -> vector<4x290xf32>
    %65 = tpu.concatenate %62, %61, %62 in 1 : vector<4x17xf32>, vector<4x256xf32>, vector<4x17xf32> -> vector<4x290xf32>
    %66 = vector.extract_strided_slice %63 {offsets = [0, 0], sizes = [4, 256], strides = [1, 1]} : vector<4x290xf32> to vector<4x256xf32>
    %67 = vector.extract_strided_slice %64 {offsets = [0, 1], sizes = [4, 256], strides = [1, 1]} : vector<4x290xf32> to vector<4x256xf32>
    %68 = vector.extract_strided_slice %65 {offsets = [0, 2], sizes = [4, 256], strides = [1, 1]} : vector<4x290xf32> to vector<4x256xf32>
    %69 = vector.extract_strided_slice %63 {offsets = [0, 16], sizes = [4, 256], strides = [1, 1]} : vector<4x290xf32> to vector<4x256xf32>
    %70 = vector.extract_strided_slice %64 {offsets = [0, 17], sizes = [4, 256], strides = [1, 1]} : vector<4x290xf32> to vector<4x256xf32>
    %71 = vector.extract_strided_slice %65 {offsets = [0, 18], sizes = [4, 256], strides = [1, 1]} : vector<4x290xf32> to vector<4x256xf32>
    %72 = vector.extract_strided_slice %63 {offsets = [0, 32], sizes = [4, 256], strides = [1, 1]} : vector<4x290xf32> to vector<4x256xf32>
    %73 = vector.extract_strided_slice %64 {offsets = [0, 33], sizes = [4, 256], strides = [1, 1]} : vector<4x290xf32> to vector<4x256xf32>
    %74 = vector.extract_strided_slice %65 {offsets = [0, 34], sizes = [4, 256], strides = [1, 1]} : vector<4x290xf32> to vector<4x256xf32>
    %75 = tpu.concatenate %66, %67, %68, %69, %70, %71, %72, %73, %74 in 0 : vector<4x256xf32>, vector<4x256xf32>, vector<4x256xf32>, vector<4x256xf32>, vector<4x256xf32>, vector<4x256xf32>, vector<4x256xf32>, vector<4x256xf32>, vector<4x256xf32> -> vector<36x256xf32>
    %c0_20 = arith.constant 0 : index
    %c0_21 = arith.constant 0 : index
    %76 = vector.load %arg5[%c0_20, %c0_21] : memref<8x36xf32, #tpu.memory_space<vmem>>, vector<8x36xf32>
    %cst_22 = arith.constant dense<0.000000e+00> : vector<8x256xf32>
    %77 = tpu.matmul %76, %75, %cst_22 {dimension_numbers = #tpu.dot_dimension_numbers<[1], [0], [0], [1], [0, 0, 1, 1], [], []>} : vector<8x36xf32>, vector<36x256xf32>, vector<8x256xf32> -> vector<8x256xf32>
    %c0_23 = arith.constant 0 : index
    %c0_24 = arith.constant 0 : index
    %78 = vector.load %arg6[%c0_23, %c0_24] : memref<8x1xf32, #tpu.memory_space<vmem>>, vector<8x1xf32>
    %79 = vector.broadcast %78 : vector<8x1xf32> to vector<8x256xf32>
    %80 = arith.addf %77, %79 : vector<8x256xf32>
    %c0_25 = arith.constant 0 : index
    %c0_26 = arith.constant 0 : index
    %81 = vector.load %arg7[%c0_25, %c0_26] : memref<8x8xf32, #tpu.memory_space<vmem>>, vector<8x8xf32>
    %c0_27 = arith.constant 0 : index
    %c0_28 = arith.constant 0 : index
    %82 = vector.load %arg8[%c0_27, %c0_28] : memref<8x1xf32, #tpu.memory_space<vmem>>, vector<8x1xf32>
    %c0_29 = arith.constant 0 : index
    %c0_30 = arith.constant 0 : index
    %83 = vector.load %arg9[%c0_29, %c0_30] : memref<8x1xf32, #tpu.memory_space<vmem>>, vector<8x1xf32>
    %cst_31 = arith.constant dense<0.000000e+00> : vector<8x256xf32>
    %84 = tpu.matmul %81, %80, %cst_31 {dimension_numbers = #tpu.dot_dimension_numbers<[1], [0], [0], [1], [0, 0, 1, 1], [], []>} : vector<8x8xf32>, vector<8x256xf32>, vector<8x256xf32> -> vector<8x256xf32>
    %cst_32 = arith.constant dense<0.000000e+00> : vector<8xf32>
    %85 = vector.multi_reduction <add>, %84, %cst_32 [1] : vector<8x256xf32> to vector<8xf32>
    %86 = vector.shape_cast %85 : vector<8xf32> to vector<8x1xf32>
    %cst_33 = arith.constant 2.560000e+02 : f32
    %87 = vector.broadcast %cst_33 : f32 to vector<8x1xf32>
    %88 = arith.divf %86, %87 : vector<8x1xf32>
    %89 = vector.broadcast %88 : vector<8x1xf32> to vector<8x256xf32>
    %90 = arith.subf %80, %89 : vector<8x256xf32>
    %91 = arith.mulf %90, %90 : vector<8x256xf32>
    %cst_34 = arith.constant dense<0.000000e+00> : vector<8x256xf32>
    %92 = tpu.matmul %81, %91, %cst_34 {dimension_numbers = #tpu.dot_dimension_numbers<[1], [0], [0], [1], [0, 0, 1, 1], [], []>} : vector<8x8xf32>, vector<8x256xf32>, vector<8x256xf32> -> vector<8x256xf32>
    %cst_35 = arith.constant dense<0.000000e+00> : vector<8xf32>
    %93 = vector.multi_reduction <add>, %92, %cst_35 [1] : vector<8x256xf32> to vector<8xf32>
    %94 = vector.shape_cast %93 : vector<8xf32> to vector<8x1xf32>
    %cst_36 = arith.constant 2.560000e+02 : f32
    %95 = vector.broadcast %cst_36 : f32 to vector<8x1xf32>
    %96 = arith.divf %94, %95 : vector<8x1xf32>
    %cst_37 = arith.constant 9.99999974E-6 : f32
    %97 = vector.broadcast %cst_37 : f32 to vector<8x1xf32>
    %98 = arith.addf %96, %97 : vector<8x1xf32>
    %99 = math.rsqrt %98 : vector<8x1xf32>
    %100 = vector.broadcast %99 : vector<8x1xf32> to vector<8x256xf32>
    %101 = arith.mulf %90, %100 : vector<8x256xf32>
    %102 = vector.broadcast %82 : vector<8x1xf32> to vector<8x256xf32>
    %103 = arith.mulf %101, %102 : vector<8x256xf32>
    %104 = vector.broadcast %83 : vector<8x1xf32> to vector<8x256xf32>
    %105 = arith.addf %103, %104 : vector<8x256xf32>
    %106 = arith.negf %105 : vector<8x256xf32>
    %107 = math.exp %106 : vector<8x256xf32>
    %cst_38 = arith.constant 1.000000e+00 : f32
    %108 = vector.broadcast %cst_38 : f32 to vector<8x256xf32>
    %109 = arith.addf %108, %107 : vector<8x256xf32>
    %110 = arith.divf %108, %109 : vector<8x256xf32>
    %111 = arith.mulf %105, %110 : vector<8x256xf32>
    %112 = tpu.iota {dimensions = array<i32: 1>} : vector<1x256xi32>
    %c16_i32_39 = arith.constant 16 : i32
    %c0_i32_40 = arith.constant 0 : i32
    %113 = arith.cmpi eq, %c16_i32_39, %c0_i32_40 : i32
    %c1_i32_41 = arith.constant 1 : i32
    %114 = arith.select %113, %c1_i32_41, %c16_i32_39 : i32
    %115 = vector.broadcast %114 : i32 to vector<1x256xi32>
    %116 = arith.remsi %112, %115 : vector<1x256xi32>
    %c0_i32_42 = arith.constant 0 : i32
    %117 = vector.broadcast %c0_i32_42 : i32 to vector<1x256xi32>
    %118 = arith.cmpi ne, %116, %117 : vector<1x256xi32>
    %c0_i32_43 = arith.constant 0 : i32
    %119 = vector.broadcast %c0_i32_43 : i32 to vector<1x256xi32>
    %120 = arith.cmpi slt, %116, %119 : vector<1x256xi32>
    %c0_i32_44 = arith.constant 0 : i32
    %121 = arith.cmpi slt, %114, %c0_i32_44 : i32
    %122 = vector.broadcast %121 : i1 to vector<1x256xi1>
    %123 = vector.broadcast %122 : vector<1x256xi1> to vector<1x256xi1>
    %124 = arith.xori %120, %123 : vector<1x256xi1>
    %125 = arith.andi %124, %118 : vector<1x256xi1>
    %126 = vector.broadcast %114 : i32 to vector<1x256xi32>
    %127 = arith.addi %116, %126 : vector<1x256xi32>
    %128 = arith.select %125, %127, %116 : vector<1x256xi1>, vector<1x256xi32>
    %c15_i32_45 = arith.constant 15 : i32
    %129 = vector.broadcast %c15_i32_45 : i32 to vector<1x256xi32>
    %130 = arith.cmpi ne, %128, %129 : vector<1x256xi32>
    %131 = arith.extui %130 : vector<1x256xi1> to vector<1x256xi32>
    %132 = arith.sitofp %131 : vector<1x256xi32> to vector<1x256xf32>
    %133 = vector.broadcast %132 : vector<1x256xf32> to vector<8x256xf32>
    %134 = arith.mulf %111, %133 : vector<8x256xf32>
    %c0_i32_46 = arith.constant 0 : i32
    %135 = vector.broadcast %c0_i32_46 : i32 to vector<1x256xi32>
    %136 = arith.cmpi ne, %128, %135 : vector<1x256xi32>
    %137 = arith.extui %136 : vector<1x256xi1> to vector<1x256xi32>
    %138 = arith.sitofp %137 : vector<1x256xi32> to vector<1x256xf32>
    %139 = vector.broadcast %138 : vector<1x256xf32> to vector<8x256xf32>
    %140 = arith.mulf %111, %139 : vector<8x256xf32>
    %cst_47 = arith.constant 0.000000e+00 : f32
    %141 = vector.broadcast %cst_47 : f32 to vector<8x17xf32>
    %142 = tpu.concatenate %141, %134, %141 in 1 : vector<8x17xf32>, vector<8x256xf32>, vector<8x17xf32> -> vector<8x290xf32>
    %143 = tpu.concatenate %141, %111, %141 in 1 : vector<8x17xf32>, vector<8x256xf32>, vector<8x17xf32> -> vector<8x290xf32>
    %144 = tpu.concatenate %141, %140, %141 in 1 : vector<8x17xf32>, vector<8x256xf32>, vector<8x17xf32> -> vector<8x290xf32>
    %145 = vector.extract_strided_slice %142 {offsets = [0, 0], sizes = [8, 256], strides = [1, 1]} : vector<8x290xf32> to vector<8x256xf32>
    %146 = vector.extract_strided_slice %143 {offsets = [0, 1], sizes = [8, 256], strides = [1, 1]} : vector<8x290xf32> to vector<8x256xf32>
    %147 = vector.extract_strided_slice %144 {offsets = [0, 2], sizes = [8, 256], strides = [1, 1]} : vector<8x290xf32> to vector<8x256xf32>
    %148 = vector.extract_strided_slice %142 {offsets = [0, 16], sizes = [8, 256], strides = [1, 1]} : vector<8x290xf32> to vector<8x256xf32>
    %149 = vector.extract_strided_slice %143 {offsets = [0, 17], sizes = [8, 256], strides = [1, 1]} : vector<8x290xf32> to vector<8x256xf32>
    %150 = vector.extract_strided_slice %144 {offsets = [0, 18], sizes = [8, 256], strides = [1, 1]} : vector<8x290xf32> to vector<8x256xf32>
    %151 = vector.extract_strided_slice %142 {offsets = [0, 32], sizes = [8, 256], strides = [1, 1]} : vector<8x290xf32> to vector<8x256xf32>
    %152 = vector.extract_strided_slice %143 {offsets = [0, 33], sizes = [8, 256], strides = [1, 1]} : vector<8x290xf32> to vector<8x256xf32>
    %153 = vector.extract_strided_slice %144 {offsets = [0, 34], sizes = [8, 256], strides = [1, 1]} : vector<8x290xf32> to vector<8x256xf32>
    %154 = tpu.concatenate %145, %146, %147, %148, %149, %150, %151, %152, %153 in 0 : vector<8x256xf32>, vector<8x256xf32>, vector<8x256xf32>, vector<8x256xf32>, vector<8x256xf32>, vector<8x256xf32>, vector<8x256xf32>, vector<8x256xf32>, vector<8x256xf32> -> vector<72x256xf32>
    %155 = tpu.concatenate %154, %1 in 0 : vector<72x256xf32>, vector<4x256xf32> -> vector<76x256xf32>
    %c0_48 = arith.constant 0 : index
    %c0_49 = arith.constant 0 : index
    %156 = vector.load %arg10[%c0_48, %c0_49] : memref<8x76xf32, #tpu.memory_space<vmem>>, vector<8x76xf32>
    %cst_50 = arith.constant dense<0.000000e+00> : vector<8x256xf32>
    %157 = tpu.matmul %156, %155, %cst_50 {dimension_numbers = #tpu.dot_dimension_numbers<[1], [0], [0], [1], [0, 0, 1, 1], [], []>} : vector<8x76xf32>, vector<76x256xf32>, vector<8x256xf32> -> vector<8x256xf32>
    %c0_51 = arith.constant 0 : index
    %c0_52 = arith.constant 0 : index
    %158 = vector.load %arg11[%c0_51, %c0_52] : memref<8x1xf32, #tpu.memory_space<vmem>>, vector<8x1xf32>
    %159 = vector.broadcast %158 : vector<8x1xf32> to vector<8x256xf32>
    %160 = arith.addf %157, %159 : vector<8x256xf32>
    %c0_53 = arith.constant 0 : index
    %c0_54 = arith.constant 0 : index
    %c0_55 = arith.constant 0 : index
    %161 = vector.load %arg12[%c0_53, %c0_54, %c0_55] : memref<1x8x256xf32, #tpu.memory_space<vmem>>, vector<1x8x256xf32>
    %162 = vector.shape_cast %161 : vector<1x8x256xf32> to vector<8x256xf32>
    %163 = vector.shape_cast %160 : vector<8x256xf32> to vector<1x8x256xf32>
    tpu.vector_store %arg12[%c0_53, %c0_54, %c0_55], %163 {strides = array<i32>} : memref<1x8x256xf32, #tpu.memory_space<vmem>>, vector<1x8x256xf32>,
    return
  }
  func.func @transform_0(%arg0: i32) -> (i32, i32, i32) {
    %c0_i32 = arith.constant 0 : i32
    %c0_i32_0 = arith.constant 0 : i32
    %c0_i32_1 = arith.constant 0 : i32
    return %arg0, %c0_i32, %c0_i32_0 : i32, i32, i32
  }
  func.func @transform_1(%arg0: i32) -> (i32, i32) {
    %c0_i32 = arith.constant 0 : i32
    %c0_i32_0 = arith.constant 0 : i32
    %c0_i32_1 = arith.constant 0 : i32
    return %c0_i32, %c0_i32_0 : i32, i32
  }
  func.func @transform_2(%arg0: i32) -> (i32, i32) {
    %c0_i32 = arith.constant 0 : i32
    %c0_i32_0 = arith.constant 0 : i32
    %c0_i32_1 = arith.constant 0 : i32
    return %c0_i32, %c0_i32_0 : i32, i32
  }
  func.func @transform_3(%arg0: i32) -> (i32, i32) {
    %c0_i32 = arith.constant 0 : i32
    %c0_i32_0 = arith.constant 0 : i32
    %c0_i32_1 = arith.constant 0 : i32
    return %c0_i32, %c0_i32_0 : i32, i32
  }
  func.func @transform_4(%arg0: i32) -> (i32, i32) {
    %c0_i32 = arith.constant 0 : i32
    %c0_i32_0 = arith.constant 0 : i32
    %c0_i32_1 = arith.constant 0 : i32
    return %c0_i32, %c0_i32_0 : i32, i32
  }
  func.func @transform_5(%arg0: i32) -> (i32, i32) {
    %c0_i32 = arith.constant 0 : i32
    %c0_i32_0 = arith.constant 0 : i32
    %c0_i32_1 = arith.constant 0 : i32
    return %c0_i32, %c0_i32_0 : i32, i32
  }
  func.func @transform_6(%arg0: i32) -> (i32, i32) {
    %c0_i32 = arith.constant 0 : i32
    %c0_i32_0 = arith.constant 0 : i32
    %c0_i32_1 = arith.constant 0 : i32
    return %c0_i32, %c0_i32_0 : i32, i32
  }
  func.func @transform_7(%arg0: i32) -> (i32, i32) {
    %c0_i32 = arith.constant 0 : i32
    %c0_i32_0 = arith.constant 0 : i32
    %c0_i32_1 = arith.constant 0 : i32
    return %c0_i32, %c0_i32_0 : i32, i32
  }
  func.func @transform_8(%arg0: i32) -> (i32, i32) {
    %c0_i32 = arith.constant 0 : i32
    %c0_i32_0 = arith.constant 0 : i32
    %c0_i32_1 = arith.constant 0 : i32
    return %c0_i32, %c0_i32_0 : i32, i32
  }
  func.func @transform_9(%arg0: i32) -> (i32, i32) {
    %c0_i32 = arith.constant 0 : i32
    %c0_i32_0 = arith.constant 0 : i32
    %c0_i32_1 = arith.constant 0 : i32
    return %c0_i32, %c0_i32_0 : i32, i32
  }
  func.func @transform_10(%arg0: i32) -> (i32, i32) {
    %c0_i32 = arith.constant 0 : i32
    %c0_i32_0 = arith.constant 0 : i32
    %c0_i32_1 = arith.constant 0 : i32
    return %c0_i32, %c0_i32_0 : i32, i32
  }
  func.func @transform_11(%arg0: i32) -> (i32, i32, i32) {
    %c0_i32 = arith.constant 0 : i32
    %c0_i32_0 = arith.constant 0 : i32
    %c0_i32_1 = arith.constant 0 : i32
    return %arg0, %c0_i32, %c0_i32_0 : i32, i32, i32
  }
}

</mosaic_0001>

<llo_original>
// kernel: tpu_custom_call.1
$region0: #{tpu_custom_call.1}
  #allocation0 [shape = 'u32[]', space=smem, size = 0x4, offset = 0x4, fixed_abs, tag = 'smem constant byte address 0x4 - core index']
  #allocation1 [shape = 'u32[144,128]{1,0:T(1,128)}', space=vmem, size = 0x12000, scoped, tag = 'internal scratch']
  %s0 = inlined_call_operand.vmem [shape: f32[2,4,256], index: 0, kind: input, shape index: {}]
  %s1 = inlined_call_operand.vmem [shape: f32[4,4], index: 1, kind: input, shape index: {}]
  %s2 = inlined_call_operand.vmem [shape: f32[4,1], index: 2, kind: input, shape index: {}]
  %s3 = inlined_call_operand.vmem [shape: f32[4,1], index: 3, kind: input, shape index: {}]
  %s4 = inlined_call_operand.vmem [shape: f32[8,36], index: 4, kind: input, shape index: {}]
  %s5 = inlined_call_operand.vmem [shape: f32[8,1], index: 5, kind: input, shape index: {}]
  %s6 = inlined_call_operand.vmem [shape: f32[8,8], index: 6, kind: input, shape index: {}]
  %s7 = inlined_call_operand.vmem [shape: f32[8,1], index: 7, kind: input, shape index: {}]
  %s8 = inlined_call_operand.vmem [shape: f32[8,1], index: 8, kind: input, shape index: {}]
  %s9 = inlined_call_operand.vmem [shape: f32[8,76], index: 9, kind: input, shape index: {}]
  %s10 = inlined_call_operand.vmem [shape: f32[8,1], index: 10, kind: input, shape index: {}]
  %s11 = inlined_call_operand.hbm [shape: f32[2,8,256], index: 11, kind: output, shape index: {}]
  %s12 = sld [smem:[#allocation0]]
  $region77: #{tpu_custom_call.1} parent=0
    _
  %s14 = ssub.s32 1, %s12
  %s15 = scalar_select 0, %s14, %s12
  $region1: #{tpu_custom_call.1} parent=0
    #allocation2 [shape = 'u8[16384]{0}', space=vmem, size = 0x4000, scoped, tag = 'output window, operand 0']
    #allocation3 [shape = 's32[2]{0}', space=sflag, size = 0x8, scoped, tag = 'scoped memory for tpu_custom_call.1']
    %16 = vsyncpa [#allocation3], 0
    %s17 = scalar_lea.sflag [#allocation3], 1
    %18 = vsyncpa %s17, 0
    loop: start=0, step=1, limit=4
    $region2: #{tpu_custom_call.1} parent=1 // loop_pre_header
      _
    $region3: #{tpu_custom_call.1} parent=1 // loop_header
      %s20 = sphi 0, %s24
      %p21 = scmp.ge.s32.totalorder %s20, 4
      %s30 = sphi 0, %s32
      %s33 = sphi 0, %s30
      %s34 = sphi 0, %s33
      %s50 = sphi 0, %s34
      %s54 = sphi 0, %s54
      %s56 = sphi 0, %s54
      %s57 = sphi 0, %s56
      %s71 = sphi 0, %s57
      %s75 = sphi 0, %s75
      %s77 = sphi 0, %s75
      %s78 = sphi 0, %s77
      %s92 = sphi 0, %s78
      %s96 = sphi 0, %s96
      %s98 = sphi 0, %s96
      %s99 = sphi 0, %s98
      %s113 = sphi 0, %s99
      %s117 = sphi 0, %s117
      %s119 = sphi 0, %s117
      %s120 = sphi 0, %s119
      %s134 = sphi 0, %s120
      %s138 = sphi 0, %s138
      %s140 = sphi 0, %s138
      %s141 = sphi 0, %s140
      %s155 = sphi 0, %s141
      %s159 = sphi 0, %s159
      %s161 = sphi 0, %s159
      %s162 = sphi 0, %s161
      %s176 = sphi 0, %s162
      %s180 = sphi 0, %s180
      %s182 = sphi 0, %s180
      %s183 = sphi 0, %s182
      %s197 = sphi 0, %s183
      %s201 = sphi 0, %s201
      %s203 = sphi 0, %s201
      %s204 = sphi 0, %s203
      %s218 = sphi 0, %s204
      %s222 = sphi 0, %s222
      %s224 = sphi 0, %s222
      %s225 = sphi 0, %s224
      %s239 = sphi 0, %s225
      %s243 = sphi 0, %s243
      %s245 = sphi 0, %s243
      %s246 = sphi 0, %s245
      %s260 = sphi 0, %s246
      %s266 = sphi 0, %s268
      %s269 = sphi 0, %s266
      %s270 = sphi 0, %s269
      %s286 = sphi 0, %s270
    $region4: #{tpu_custom_call.1} parent=1 // loop_header_branch
      %23 = sbr.rel (%p21) target = $region8
    $region5: #{tpu_custom_call.1} parent=1 // loop_body
      %s25 = ssub.s32 %s20, 1
      %s26 = ssub.s32 %s20, 2
      %s27 = sadd.s32 %s20, 1
      %s28 = ssub.s32 %s20, %s27
      %p29 = scmp.eq.s32.totalorder %s28, 0
      %s31 = sadd.s32 %s30, 1
      %s32 = scalar_select %p29, %s30, %s31
      %p35 = pneg %p29
      %p36 = scmp.eq.s32.totalorder %s20, 1
      %p37 = por %p35, %p36
      %p38 = scmp.ne.s32.totalorder %s30, %s33
      %p39 = scmp.eq.s32.totalorder %s20, 0
      %p40 = por %p38, %p39
      %p41 = scmp.ne.s32.totalorder %s30, %s33
      %p42 = scmp.eq.s32.totalorder %s25, 1
      %p43 = por %p41, %p42
      %p44 = scmp.ne.s32.totalorder %s33, %s34
      %p45 = scmp.eq.s32.totalorder %s25, 0
      %p46 = por %p44, %p45
      %p47 = scmp.ne.s32.totalorder %s33, %s34
      %p48 = scmp.eq.s32.totalorder %s26, 1
      %p49 = por %p47, %p48
      %p51 = scmp.ne.s32.totalorder %s34, %s50
      %p52 = scmp.eq.s32.totalorder %s26, 0
      %p53 = por %p51, %p52
      %s55 = sadd.s32 %s54, 1
      %p58 = scmp.eq.s32.totalorder %s20, 1
      %p59 = scmp.ne.s32.totalorder %s54, %s56
      %p60 = scmp.eq.s32.totalorder %s20, 0
      %p61 = por %p59, %p60
      %p62 = scmp.ne.s32.totalorder %s54, %s56
      %p63 = scmp.eq.s32.totalorder %s25, 1
      %p64 = por %p62, %p63
      %p65 = scmp.ne.s32.totalorder %s56, %s57
      %p66 = scmp.eq.s32.totalorder %s25, 0
      %p67 = por %p65, %p66
      %p68 = scmp.ne.s32.totalorder %s56, %s57
      %p69 = scmp.eq.s32.totalorder %s26, 1
      %p70 = por %p68, %p69
      %p72 = scmp.ne.s32.totalorder %s57, %s71
      %p73 = scmp.eq.s32.totalorder %s26, 0
      %p74 = por %p72, %p73
      %s76 = sadd.s32 %s75, 1
      %p79 = scmp.eq.s32.totalorder %s20, 1
      %p80 = scmp.ne.s32.totalorder %s75, %s77
      %p81 = scmp.eq.s32.totalorder %s20, 0
      %p82 = por %p80, %p81
      %p83 = scmp.ne.s32.totalorder %s75, %s77
      %p84 = scmp.eq.s32.totalorder %s25, 1
      %p85 = por %p83, %p84
      %p86 = scmp.ne.s32.totalorder %s77, %s78
      %p87 = scmp.eq.s32.totalorder %s25, 0
      %p88 = por %p86, %p87
      %p89 = scmp.ne.s32.totalorder %s77, %s78
      %p90 = scmp.eq.s32.totalorder %s26, 1
      %p91 = por %p89, %p90
      %p93 = scmp.ne.s32.totalorder %s78, %s92
      %p94 = scmp.eq.s32.totalorder %s26, 0
      %p95 = por %p93, %p94
      %s97 = sadd.s32 %s96, 1
      %p100 = scmp.eq.s32.totalorder %s20, 1
      %p101 = scmp.ne.s32.totalorder %s96, %s98
      %p102 = scmp.eq.s32.totalorder %s20, 0
      %p103 = por %p101, %p102
      %p104 = scmp.ne.s32.totalorder %s96, %s98
      %p105 = scmp.eq.s32.totalorder %s25, 1
      %p106 = por %p104, %p105
      %p107 = scmp.ne.s32.totalorder %s98, %s99
      %p108 = scmp.eq.s32.totalorder %s25, 0
      %p109 = por %p107, %p108
      %p110 = scmp.ne.s32.totalorder %s98, %s99
      %p111 = scmp.eq.s32.totalorder %s26, 1
      %p112 = por %p110, %p111
      %p114 = scmp.ne.s32.totalorder %s99, %s113
      %p115 = scmp.eq.s32.totalorder %s26, 0
      %p116 = por %p114, %p115
      %s118 = sadd.s32 %s117, 1
      %p121 = scmp.eq.s32.totalorder %s20, 1
      %p122 = scmp.ne.s32.totalorder %s117, %s119
      %p123 = scmp.eq.s32.totalorder %s20, 0
      %p124 = por %p122, %p123
      %p125 = scmp.ne.s32.totalorder %s117, %s119
      %p126 = scmp.eq.s32.totalorder %s25, 1
      %p127 = por %p125, %p126
      %p128 = scmp.ne.s32.totalorder %s119, %s120
      %p129 = scmp.eq.s32.totalorder %s25, 0
      %p130 = por %p128, %p129
      %p131 = scmp.ne.s32.totalorder %s119, %s120
      %p132 = scmp.eq.s32.totalorder %s26, 1
      %p133 = por %p131, %p132
      %p135 = scmp.ne.s32.totalorder %s120, %s134
      %p136 = scmp.eq.s32.totalorder %s26, 0
      %p137 = por %p135, %p136
      %s139 = sadd.s32 %s138, 1
      %p142 = scmp.eq.s32.totalorder %s20, 1
      %p143 = scmp.ne.s32.totalorder %s138, %s140
      %p144 = scmp.eq.s32.totalorder %s20, 0
      %p145 = por %p143, %p144
      %p146 = scmp.ne.s32.totalorder %s138, %s140
      %p147 = scmp.eq.s32.totalorder %s25, 1
      %p148 = por %p146, %p147
      %p149 = scmp.ne.s32.totalorder %s140, %s141
      %p150 = scmp.eq.s32.totalorder %s25, 0
      %p151 = por %p149, %p150
      %p152 = scmp.ne.s32.totalorder %s140, %s141
      %p153 = scmp.eq.s32.totalorder %s26, 1
      %p154 = por %p152, %p153
      %p156 = scmp.ne.s32.totalorder %s141, %s155
      %p157 = scmp.eq.s32.totalorder %s26, 0
      %p158 = por %p156, %p157
      %s160 = sadd.s32 %s159, 1
      %p163 = scmp.eq.s32.totalorder %s20, 1
      %p164 = scmp.ne.s32.totalorder %s159, %s161
      %p165 = scmp.eq.s32.totalorder %s20, 0
      %p166 = por %p164, %p165
      %p167 = scmp.ne.s32.totalorder %s159, %s161
      %p168 = scmp.eq.s32.totalorder %s25, 1
      %p169 = por %p167, %p168
      %p170 = scmp.ne.s32.totalorder %s161, %s162
      %p171 = scmp.eq.s32.totalorder %s25, 0
      %p172 = por %p170, %p171
      %p173 = scmp.ne.s32.totalorder %s161, %s162
      %p174 = scmp.eq.s32.totalorder %s26, 1
      %p175 = por %p173, %p174
      %p177 = scmp.ne.s32.totalorder %s162, %s176
      %p178 = scmp.eq.s32.totalorder %s26, 0
      %p179 = por %p177, %p178
      %s181 = sadd.s32 %s180, 1
      %p184 = scmp.eq.s32.totalorder %s20, 1
      %p185 = scmp.ne.s32.totalorder %s180, %s182
      %p186 = scmp.eq.s32.totalorder %s20, 0
      %p187 = por %p185, %p186
      %p188 = scmp.ne.s32.totalorder %s180, %s182
      %p189 = scmp.eq.s32.totalorder %s25, 1
      %p190 = por %p188, %p189
      %p191 = scmp.ne.s32.totalorder %s182, %s183
      %p192 = scmp.eq.s32.totalorder %s25, 0
      %p193 = por %p191, %p192
      %p194 = scmp.ne.s32.totalorder %s182, %s183
      %p195 = scmp.eq.s32.totalorder %s26, 1
      %p196 = por %p194, %p195
      %p198 = scmp.ne.s32.totalorder %s183, %s197
      %p199 = scmp.eq.s32.totalorder %s26, 0
      %p200 = por %p198, %p199
      %s202 = sadd.s32 %s201, 1
      %p205 = scmp.eq.s32.totalorder %s20, 1
      %p206 = scmp.ne.s32.totalorder %s201, %s203
      %p207 = scmp.eq.s32.totalorder %s20, 0
      %p208 = por %p206, %p207
      %p209 = scmp.ne.s32.totalorder %s201, %s203
      %p210 = scmp.eq.s32.totalorder %s25, 1
      %p211 = por %p209, %p210
      %p212 = scmp.ne.s32.totalorder %s203, %s204
      %p213 = scmp.eq.s32.totalorder %s25, 0
      %p214 = por %p212, %p213
      %p215 = scmp.ne.s32.totalorder %s203, %s204
      %p216 = scmp.eq.s32.totalorder %s26, 1
      %p217 = por %p215, %p216
      %p219 = scmp.ne.s32.totalorder %s204, %s218
      %p220 = scmp.eq.s32.totalorder %s26, 0
      %p221 = por %p219, %p220
      %s223 = sadd.s32 %s222, 1
      %p226 = scmp.eq.s32.totalorder %s20, 1
      %p227 = scmp.ne.s32.totalorder %s222, %s224
      %p228 = scmp.eq.s32.totalorder %s20, 0
      %p229 = por %p227, %p228
      %p230 = scmp.ne.s32.totalorder %s222, %s224
      %p231 = scmp.eq.s32.totalorder %s25, 1
      %p232 = por %p230, %p231
      %p233 = scmp.ne.s32.totalorder %s224, %s225
      %p234 = scmp.eq.s32.totalorder %s25, 0
      %p235 = por %p233, %p234
      %p236 = scmp.ne.s32.totalorder %s224, %s225
      %p237 = scmp.eq.s32.totalorder %s26, 1
      %p238 = por %p236, %p237
      %p240 = scmp.ne.s32.totalorder %s225, %s239
      %p241 = scmp.eq.s32.totalorder %s26, 0
      %p242 = por %p240, %p241
      %s244 = sadd.s32 %s243, 1
      %p247 = scmp.eq.s32.totalorder %s20, 1
      %p248 = scmp.ne.s32.totalorder %s243, %s245
      %p249 = scmp.eq.s32.totalorder %s20, 0
      %p250 = por %p248, %p249
      %p251 = scmp.ne.s32.totalorder %s243, %s245
      %p252 = scmp.eq.s32.totalorder %s25, 1
      %p253 = por %p251, %p252
      %p254 = scmp.ne.s32.totalorder %s245, %s246
      %p255 = scmp.eq.s32.totalorder %s25, 0
      %p256 = por %p254, %p255
      %p257 = scmp.ne.s32.totalorder %s245, %s246
      %p258 = scmp.eq.s32.totalorder %s26, 1
      %p259 = por %p257, %p258
      %p261 = scmp.ne.s32.totalorder %s246, %s260
      %p262 = scmp.eq.s32.totalorder %s26, 0
      %p263 = por %p261, %p262
      %s264 = ssub.s32 %s20, %s27
      %p265 = scmp.eq.s32.totalorder %s264, 0
      %s267 = sadd.s32 %s266, 1
      %s268 = scalar_select %p265, %s266, %s267
      %p271 = pneg %p265
      %p272 = scmp.eq.s32.totalorder %s20, 1
      %p273 = por %p271, %p272
      %p274 = scmp.ne.s32.totalorder %s266, %s269
      %p275 = scmp.eq.s32.totalorder %s20, 0
      %p276 = por %p274, %p275
      %p277 = scmp.ne.s32.totalorder %s266, %s269
      %p278 = scmp.eq.s32.totalorder %s25, 1
      %p279 = por %p277, %p278
      %p280 = scmp.ne.s32.totalorder %s269, %s270
      %p281 = scmp.eq.s32.totalorder %s25, 0
      %p282 = por %p280, %p281
      %p283 = scmp.ne.s32.totalorder %s269, %s270
      %p284 = scmp.eq.s32.totalorder %s26, 1
      %p285 = por %p283, %p284
      %p287 = scmp.ne.s32.totalorder %s270, %s286
      %p288 = scmp.eq.s32.totalorder %s26, 0
      %p289 = por %p287, %p288
      %p290 = scmp.le.s32.totalorder 1, %s20
      %p291 = scmp.lt.s32.totalorder %s20, 3
      %p292 = pnand %p290, %p291
      %p293 = pneg %p292
      // Predicated region
      $region9: #{tpu_custom_call.1} parent=5 // pred_check
        _
      $region10: #{tpu_custom_call.1} parent=5 // pred_check_branch
        %295 = sbr.rel (%p292) target = $region12
      $region11: #{tpu_custom_call.1} parent=5 // pred_region
        %s296 = ssub.s32 %s20, 1
        // Predicated region
        $region13: #{tpu_custom_call.1} parent=11 // pred_check
          %p297 = pneg %p67
        $region14: #{tpu_custom_call.1} parent=11 // pred_check_branch
          %299 = sbr.rel (%p297) target = $region16
        $region15: #{tpu_custom_call.1} parent=11 // pred_region
          _
        $region16: #{tpu_custom_call.1} parent=11 // pred_fallthru
          _
        // Predicated region
        $region17: #{tpu_custom_call.1} parent=11 // pred_check
          %p300 = pneg %p88
        $region18: #{tpu_custom_call.1} parent=11 // pred_check_branch
          %302 = sbr.rel (%p300) target = $region20
        $region19: #{tpu_custom_call.1} parent=11 // pred_region
          _
        $region20: #{tpu_custom_call.1} parent=11 // pred_fallthru
          _
        // Predicated region
        $region21: #{tpu_custom_call.1} parent=11 // pred_check
          %p303 = pneg %p109
        $region22: #{tpu_custom_call.1} parent=11 // pred_check_branch
          %305 = sbr.rel (%p303) target = $region24
        $region23: #{tpu_custom_call.1} parent=11 // pred_region
          _
        $region24: #{tpu_custom_call.1} parent=11 // pred_fallthru
          _
        // Predicated region
        $region25: #{tpu_custom_call.1} parent=11 // pred_check
          %p306 = pneg %p130
        $region26: #{tpu_custom_call.1} parent=11 // pred_check_branch
          %308 = sbr.rel (%p306) target = $region28
        $region27: #{tpu_custom_call.1} parent=11 // pred_region
          _
        $region28: #{tpu_custom_call.1} parent=11 // pred_fallthru
          _
        // Predicated region
        $region29: #{tpu_custom_call.1} parent=11 // pred_check
          %p309 = pneg %p151
        $region30: #{tpu_custom_call.1} parent=11 // pred_check_branch
          %311 = sbr.rel (%p309) target = $region32
        $region31: #{tpu_custom_call.1} parent=11 // pred_region
          _
        $region32: #{tpu_custom_call.1} parent=11 // pred_fallthru
          _
        // Predicated region
        $region33: #{tpu_custom_call.1} parent=11 // pred_check
          %p312 = pneg %p172
        $region34: #{tpu_custom_call.1} parent=11 // pred_check_branch
          %314 = sbr.rel (%p312) target = $region36
        $region35: #{tpu_custom_call.1} parent=11 // pred_region
          _
        $region36: #{tpu_custom_call.1} parent=11 // pred_fallthru
          _
        // Predicated region
        $region37: #{tpu_custom_call.1} parent=11 // pred_check
          %p315 = pneg %p193
        $region38: #{tpu_custom_call.1} parent=11 // pred_check_branch
          %317 = sbr.rel (%p315) target = $region40
        $region39: #{tpu_custom_call.1} parent=11 // pred_region
          _
        $region40: #{tpu_custom_call.1} parent=11 // pred_fallthru
          _
        // Predicated region
        $region41: #{tpu_custom_call.1} parent=11 // pred_check
          %p318 = pneg %p214
        $region42: #{tpu_custom_call.1} parent=11 // pred_check_branch
          %320 = sbr.rel (%p318) target = $region44
        $region43: #{tpu_custom_call.1} parent=11 // pred_region
          _
        $region44: #{tpu_custom_call.1} parent=11 // pred_fallthru
          _
        // Predicated region
        $region45: #{tpu_custom_call.1} parent=11 // pred_check
          %p321 = pneg %p235
        $region46: #{tpu_custom_call.1} parent=11 // pred_check_branch
          %323 = sbr.rel (%p321) target = $region48
        $region47: #{tpu_custom_call.1} parent=11 // pred_region
          _
        $region48: #{tpu_custom_call.1} parent=11 // pred_fallthru
          _
        // Predicated region
        $region49: #{tpu_custom_call.1} parent=11 // pred_check
          %p324 = pneg %p256
        $region50: #{tpu_custom_call.1} parent=11 // pred_check_branch
          %326 = sbr.rel (%p324) target = $region52
        $region51: #{tpu_custom_call.1} parent=11 // pred_region
          _
        $region52: #{tpu_custom_call.1} parent=11 // pred_fallthru
          _
      $region12: #{tpu_custom_call.1} parent=5 // pred_fallthru
        _
      %p327 = scmp.lt.s32.totalorder %s20, 2
      // Predicated region
      $region53: #{tpu_custom_call.1} parent=5 // pred_check
        %p328 = pneg %p327
      $region54: #{tpu_custom_call.1} parent=5 // pred_check_branch
        %330 = sbr.rel (%p328) target = $region56
      $region55: #{tpu_custom_call.1} parent=5 // pred_region
        // Predicated region
        $region57: #{tpu_custom_call.1} parent=55 // pred_check
          %p331 = pneg %p40
        $region58: #{tpu_custom_call.1} parent=55 // pred_check_branch
          %333 = sbr.rel (%p331) target = $region60
        $region59: #{tpu_custom_call.1} parent=55 // pred_region
          %p334 = scmp.lt.s32.totalorder %s20, 1
          %s335 = scalar_select %p334, %s20, 1
          %s336 = smul.addr %s335, 2
          %s337 = smul.addr %s336, 4
          %s338 = scalar_lea.vmem %s0, %s337
        $region60: #{tpu_custom_call.1} parent=55 // pred_fallthru
          _
      $region56: #{tpu_custom_call.1} parent=5 // pred_fallthru
        _
      %p339 = scmp.le.s32.totalorder 1, %s20
      %p340 = scmp.lt.s32.totalorder %s20, 3
      %p341 = pnand %p339, %p340
      %p342 = pneg %p341
      // Predicated region
      $region61: #{tpu_custom_call.1} parent=5 // pred_check
        _
      $region62: #{tpu_custom_call.1} parent=5 // pred_check_branch
        %344 = sbr.rel (%p341) target = $region64
      $region63: #{tpu_custom_call.1} parent=5 // pred_region
        %s345 = ssub.s32 %s20, 1
        %p346 = scmp.lt.s32.totalorder %s25, 1
        %s347 = scalar_select %p346, %s25, 1
        %s348 = smul.addr %s347, 2
        %s349 = smul.addr %s348, 4
        %s350 = scalar_lea.vmem %s0, %s349
        %p351 = pneg %p46
        %p352 = pneg %p43
        %p353 = pneg %p67
        %p354 = pneg %p64
        %p355 = pneg %p88
        %p356 = pneg %p85
        %p357 = pneg %p109
        %p358 = pneg %p106
        %p359 = pneg %p130
        %p360 = pneg %p127
        %p361 = pneg %p151
        %p362 = pneg %p148
        %p363 = pneg %p172
        %p364 = pneg %p169
        %p365 = pneg %p193
        %p366 = pneg %p190
        %p367 = pneg %p214
        %p368 = pneg %p211
        %p369 = pneg %p235
        %p370 = pneg %p232
        %p371 = pneg %p256
        %p372 = pneg %p253
        %p373 = pneg %p282
        %p374 = pneg %p279
        %s375 = sand.u32 %s269, 1
        %s376 = scalar_lea.sflag [#allocation3], %s375
        %s377 = sand.u32 %s269, 1
        %s378 = smul.addr %s377, 16
        %s379 = scalar_lea.vmem [#allocation2], %s378
        %p380 = scmp.lt.s32.totalorder %s25, 1
        %s381 = scalar_select %p380, %s25, 1
        %s382 = smul.addr %s381, 2
        %s383 = smul.addr %s382, 4
        %s384 = scalar_lea.vmem %s0, %s383
        %v385 = vld [vmem:[%s384] sm:$0xff]
        %v386 = vld [vmem:[%s1] sm:$0xf]
        %v387 = vld [vmem:[%s2] sm:$0xf]
        %v388 = vld [vmem:[%s3] sm:$0xf]
        %v390 = vcombine.high %v385, %v385
        %vm391 = vcmask 31744
        %v393 = vsel %vm391, %v386, 0
        %vm395 = vcmask 1043456
        %v396 = vsel %vm395, %v385, 0
        %v398 = vsel %vm395, %v390, 0
        %400 = vmatprep.subr.mxu0 %v398
        %401 = vmatpush1.msra.mxu0 %v396
        %402 = vmatprep.subr.mxu0 0.0
        %403 = vmatpush1.msra.mxu0 0.0
        %404 = vmatprep.subr.mxu0 0.0
        %405 = vmatpush1.msra.mxu0 0.0
        %406 = vmatprep.subr.mxu0 0.0
        %407 = vmatpush1.msra.mxu0 0.0
        %408 = vmatprep.subr.mxu0 0.0
        %409 = vmatpush1.msra.mxu0 0.0
        %410 = vmatprep.subr.mxu0 0.0
        %411 = vmatpush1.msra.mxu0 0.0
        %412 = vmatprep.subr.mxu0 0.0
        %413 = vmatpush1.msra.mxu0 0.0
        %414 = vmatprep.subr.mxu0 0.0
        %415 = vmatpush1.msra.mxu0 0.0
        %416 = vmatprep.subr.mxu0 0.0
        %417 = vmatpush1.msra.mxu0 0.0
        %418 = vmatprep.subr.mxu0 0.0
        %419 = vmatpush1.msra.mxu0 0.0
        %420 = vmatprep.subr.mxu0 0.0
        %421 = vmatpush1.msra.mxu0 0.0
        %422 = vmatprep.subr.mxu0 0.0
        %423 = vmatpush1.msra.mxu0 0.0
        %424 = vmatprep.subr.mxu0 0.0
        %425 = vmatpush1.msra.mxu0 0.0
        %426 = vmatprep.subr.mxu0 0.0
        %427 = vmatpush1.msra.mxu0 0.0
        %428 = vmatprep.subr.mxu0 0.0
        %429 = vmatpush1.msra.mxu0 0.0
        %430 = vmatprep.subr.mxu0 0.0
        %431 = vmatpush1.msra.mxu0 0.0
        %432 = vmatprep.subr.mxu0 0.0
        %433 = vmatpush1.msra.mxu0 0.0
        %434 = vmatprep.subr.mxu0 0.0
        %435 = vmatpush1.msra.mxu0 0.0
        %436 = vmatprep.subr.mxu0 0.0
        %437 = vmatpush1.msra.mxu0 0.0
        %438 = vmatprep.subr.mxu0 0.0
        %439 = vmatpush1.msra.mxu0 0.0
        %440 = vmatprep.subr.mxu0 0.0
        %441 = vmatpush1.msra.mxu0 0.0
        %442 = vmatprep.subr.mxu0 0.0
        %443 = vmatpush1.msra.mxu0 0.0
        %444 = vmatprep.subr.mxu0 0.0
        %445 = vmatpush1.msra.mxu0 0.0
        %446 = vmatprep.subr.mxu0 0.0
        %447 = vmatpush1.msra.mxu0 0.0
        %448 = vmatprep.subr.mxu0 0.0
        %449 = vmatpush1.msra.mxu0 0.0
        %450 = vmatprep.subr.mxu0 0.0
        %451 = vmatpush1.msra.mxu0 0.0
        %452 = vmatprep.subr.mxu0 0.0
        %453 = vmatpush1.msra.mxu0 0.0
        %454 = vmatprep.subr.mxu0 0.0
        %455 = vmatpush1.msra.mxu0 0.0
        %456 = vmatprep.subr.mxu0 0.0
        %457 = vmatpush1.msra.mxu0 0.0
        %458 = vmatprep.subr.mxu0 0.0
        %459 = vmatpush1.msra.mxu0 0.0
        %460 = vmatprep.subr.mxu0 0.0
        %461 = vmatpush1.msra.mxu0 0.0
        %462 = vmatprep.subr.mxu0 0.0
        %463 = vmatpush1.msra.mxu0 0.0
        %464 = vmatprep.mubr.f32.mxu0 0.0
        %465 = vmatmul.mubr.f32.gmra.mrb[0].mxu0 %v393
        %v466 = vpop.f32.mrb[0].mxu0
        %v467 = vadd.f32 0.0, %v466
        %v468 = vpop.f32.mrb[0].mxu0
        %v469 = vadd.f32 0.0, %v468
        %470 = vdwg.mxu0
        %v471 = vsel %vm395, %v467, 0.0
        %v472 = vsel %vm395, %v469, 0.0
        %v473 = vadd.f32 %v471, %v472
        %474 = vadd.xlane.f32.xlu0 %v473
        %v475 = vpop.xlane.xlu0 %474
        %v476 = vrcp.pop 256.0
        %v477 = vmul.f32 %v475, %v476
        %v480 = vunpack.c.l.s4 839922192
        %v481 = vunpack.c.0.s8 %v480
        %v482 = vlaneseq
        %v483 = vshrl.u32 %v482, 7
        %v484 = vsub.s32 %v481, %v483
        %v485 = vrot.slane %v477, %v484
        %v487 = vsub.f32 %v385, %v485
        %v488 = vmul.f32 %v487, %v487
        %v490 = vcombine.high %v488, %v488
        %v491 = vsel %vm395, %v488, 0
        %v493 = vsel %vm395, %v490, 0
        %495 = vmatprep.subr.mxu0 %v493
        %496 = vmatpush1.msra.mxu0 %v491
        %497 = vmatprep.subr.mxu0 0.0
        %498 = vmatpush1.msra.mxu0 0.0
        %499 = vmatprep.subr.mxu0 0.0
        %500 = vmatpush1.msra.mxu0 0.0
        %501 = vmatprep.subr.mxu0 0.0
        %502 = vmatpush1.msra.mxu0 0.0
        %503 = vmatprep.subr.mxu0 0.0
        %504 = vmatpush1.msra.mxu0 0.0
        %505 = vmatprep.subr.mxu0 0.0
        %506 = vmatpush1.msra.mxu0 0.0
        %507 = vmatprep.subr.mxu0 0.0
        %508 = vmatpush1.msra.mxu0 0.0
        %509 = vmatprep.subr.mxu0 0.0
        %510 = vmatpush1.msra.mxu0 0.0
        %511 = vmatprep.subr.mxu0 0.0
        %512 = vmatpush1.msra.mxu0 0.0
        %513 = vmatprep.subr.mxu0 0.0
        %514 = vmatpush1.msra.mxu0 0.0
        %515 = vmatprep.subr.mxu0 0.0
        %516 = vmatpush1.msra.mxu0 0.0
        %517 = vmatprep.subr.mxu0 0.0
        %518 = vmatpush1.msra.mxu0 0.0
        %519 = vmatprep.subr.mxu0 0.0
        %520 = vmatpush1.msra.mxu0 0.0
        %521 = vmatprep.subr.mxu0 0.0
        %522 = vmatpush1.msra.mxu0 0.0
        %523 = vmatprep.subr.mxu0 0.0
        %524 = vmatpush1.msra.mxu0 0.0
        %525 = vmatprep.subr.mxu0 0.0
        %526 = vmatpush1.msra.mxu0 0.0
        %527 = vmatprep.subr.mxu0 0.0
        %528 = vmatpush1.msra.mxu0 0.0
        %529 = vmatprep.subr.mxu0 0.0
        %530 = vmatpush1.msra.mxu0 0.0
        %531 = vmatprep.subr.mxu0 0.0
        %532 = vmatpush1.msra.mxu0 0.0
        %533 = vmatprep.subr.mxu0 0.0
        %534 = vmatpush1.msra.mxu0 0.0
        %535 = vmatprep.subr.mxu0 0.0
        %536 = vmatpush1.msra.mxu0 0.0
        %537 = vmatprep.subr.mxu0 0.0
        %538 = vmatpush1.msra.mxu0 0.0
        %539 = vmatprep.subr.mxu0 0.0
        %540 = vmatpush1.msra.mxu0 0.0
        %541 = vmatprep.subr.mxu0 0.0
        %542 = vmatpush1.msra.mxu0 0.0
        %543 = vmatprep.subr.mxu0 0.0
        %544 = vmatpush1.msra.mxu0 0.0
        %545 = vmatprep.subr.mxu0 0.0
        %546 = vmatpush1.msra.mxu0 0.0
        %547 = vmatprep.subr.mxu0 0.0
        %548 = vmatpush1.msra.mxu0 0.0
        %549 = vmatprep.subr.mxu0 0.0
        %550 = vmatpush1.msra.mxu0 0.0
        %551 = vmatprep.subr.mxu0 0.0
        %552 = vmatpush1.msra.mxu0 0.0
        %553 = vmatprep.subr.mxu0 0.0
        %554 = vmatpush1.msra.mxu0 0.0
        %555 = vmatprep.subr.mxu0 0.0
        %556 = vmatpush1.msra.mxu0 0.0
        %557 = vmatprep.subr.mxu0 0.0
        %558 = vmatpush1.msra.mxu0 0.0
        %559 = vmatprep.mubr.f32.mxu0 0.0
        %560 = vmatmul.mubr.f32.gmra.mrb[0].mxu0 %v393
        %v561 = vpop.f32.mrb[0].mxu0
        %v562 = vadd.f32 0.0, %v561
        %v563 = vpop.f32.mrb[0].mxu0
        %v564 = vadd.f32 0.0, %v563
        %565 = vdwg.mxu0
        %v566 = vsel %vm395, %v562, 0.0
        %v567 = vsel %vm395, %v564, 0.0
        %v568 = vadd.f32 %v566, %v567
        %569 = vadd.xlane.f32.xlu0 %v568
        %v570 = vpop.xlane.xlu0 %569
        %v571 = vmul.f32 %v570, %v476
        %v572 = vadd.f32 %v571, 1e-05
        %v573 = vrsqrt.pop %v572
        %v576 = vunpack.c.l.s4 839922192
        %v577 = vunpack.c.0.s8 %v576
        %v578 = vlaneseq
        %v579 = vshrl.u32 %v578, 7
        %v580 = vsub.s32 %v577, %v579
        %v581 = vrot.slane %v573, %v580
        %v583 = vmul.f32 %v487, %v581
        %585 = vset.pattern.permute.xlu0 0
        %586 = vperm.xlu0 %585, %v387
        %v587 = vpop.permute.xlu0 %586
        %v589 = vunpack.c.l.s4 839922192
        %v590 = vunpack.c.0.s8 %v589
        %v591 = vlaneseq
        %v592 = vshrl.u32 %v591, 7
        %v593 = vsub.s32 %v590, %v592
        %v594 = vrot.slane %v587, %v593
        %v596 = vmul.f32 %v583, %v594
        %598 = vset.pattern.permute.xlu0 0
        %599 = vperm.xlu0 %598, %v388
        %v600 = vpop.permute.xlu0 %599
        %v602 = vunpack.c.l.s4 839922192
        %v603 = vunpack.c.0.s8 %v602
        %v604 = vlaneseq
        %v605 = vshrl.u32 %v604, 7
        %v606 = vsub.s32 %v603, %v605
        %v607 = vrot.slane %v600, %v606
        %v609 = vadd.f32 %v596, %v607
        %v610 = vxor.u32 %v609, 2147483648
        %v611 = vmul.f32 %v610, 1.442695
        %v612 = vpow.pop %v611
        %v613 = vadd.f32 %v612, 1.0
        %v614 = vrcp.pop %v613
        %v615 = vmul.f32 1.0, %v614
        %v616 = vmul.f32 %v609, %v615
        %v617 = vlaneseq
        %v618 = vand.u32 %v617, 127
        %v619 = vadd.s32 %v618, 128
        %vm620 = vcmp.lt.s32.totalorder %v618, 0
        %v621 = vsub.s32 0, %v618
        %v622 = vsel %vm620, %v621, %v618
        %v623 = vshrl.u32 %v622, 4
        %v624 = vand.u32 %v622, 15
        %v625 = vsub.s32 0, %v624
        %v626 = vsel %vm620, %v625, %v624
        %vm627 = vcmp.lt.s32.totalorder %v619, 0
        %v628 = vsub.s32 0, %v619
        %v629 = vsel %vm627, %v628, %v619
        %v630 = vshrl.u32 %v629, 4
        %v631 = vand.u32 %v629, 15
        %v632 = vsub.s32 0, %v631
        %v633 = vsel %vm627, %v632, %v631
        %vm634 = vcmp.ne.s32.totalorder %v626, 0
        %vm635 = vcmp.ne.s32.totalorder %v633, 0
        %vm636 = vcmp.lt.s32.totalorder %v626, 0
        %vm637 = vcmp.lt.s32.totalorder %v633, 0
        %vm638 = vmand %vm636, %vm634
        %vm639 = vmand %vm637, %vm635
        %v640 = vadd.s32 %v626, 16
        %v641 = vadd.s32 %v633, 16
        %v642 = vsel %vm638, %v640, %v626
        %v643 = vsel %vm639, %v641, %v633
        %vm644 = vcmp.ne.s32.totalorder %v642, 15
        %vm645 = vcmp.ne.s32.totalorder %v643, 15
        %v646 = vsel %vm644, 1, 0
        %v647 = vsel %vm645, 1, 0
        %v648 = vcvt.s32.f32 %v646
        %v649 = vcvt.s32.f32 %v647
        %v652 = vcombine.low %v648, %v649
        %v654 = vmul.f32 %v616, %v652
        %vm655 = vcmp.ne.s32.totalorder %v642, 0
        %vm656 = vcmp.ne.s32.totalorder %v643, 0
        %v657 = vsel %vm655, 1, 0
        %v658 = vsel %vm656, 1, 0
        %v659 = vcvt.s32.f32 %v657
        %v660 = vcvt.s32.f32 %v658
        %v663 = vcombine.low %v659, %v660
        %v665 = vmul.f32 %v616, %v663
        %v667 = vcombine.high %v654, %v654
        %668 = vrot.lane.b32.xlu0 %v654, 17
        %v669 = vpop.permute.xlu0 %668
        %670 = vrot.lane.b32.xlu0 %v667, 17
        %v671 = vpop.permute.xlu0 %670
        %vm672 = vcmask 138240
        %v673 = vsel %vm672, %v669, %v671
        %v677 = vsel %vm672, 0.0, %v669
        %v678 = vsel %vm672, %v671, 0.0
        %v680 = vcombine.high %v616, %v616
        %681 = vrot.lane.b32.xlu0 %v616, 17
        %v682 = vpop.permute.xlu0 %681
        %683 = vrot.lane.b32.xlu0 %v680, 17
        %v684 = vpop.permute.xlu0 %683
        %v685 = vsel %vm672, %v682, %v684
        %v688 = vsel %vm672, 0.0, %v682
        %v689 = vsel %vm672, %v684, 0.0
        %v691 = vcombine.high %v665, %v665
        %692 = vrot.lane.b32.xlu0 %v665, 17
        %v693 = vpop.permute.xlu0 %692
        %694 = vrot.lane.b32.xlu0 %v691, 17
        %v695 = vpop.permute.xlu0 %694
        %v696 = vsel %vm672, %v693, %v695
        %v699 = vsel %vm672, 0.0, %v693
        %v700 = vsel %vm672, %v695, 0.0
        %v703 = vrot.slane %v688, 4
        %v704 = vrot.slane %v685, 4
        %v705 = vrot.slane %v689, 4
        %706 = vrot.lane.b32.xlu0 %v703, 127
        %v707 = vpop.permute.xlu0 %706
        %708 = vrot.lane.b32.xlu0 %v704, 127
        %v709 = vpop.permute.xlu0 %708
        %710 = vrot.lane.b32.xlu0 %v705, 127
        %v711 = vpop.permute.xlu0 %710
        %vm712 = vcmask 1039360
        %v713 = vsel %vm712, %v707, %v709
        %v714 = vsel %vm712, %v709, %v711
        %719 = vrot.lane.b32.xlu0 %v699, 126
        %v720 = vpop.permute.xlu0 %719
        %721 = vrot.lane.b32.xlu0 %v696, 126
        %v722 = vpop.permute.xlu0 %721
        %723 = vrot.lane.b32.xlu0 %v700, 126
        %v724 = vpop.permute.xlu0 %723
        %vm725 = vcmask 1031168
        %v726 = vsel %vm725, %v720, %v722
        %v727 = vsel %vm725, %v722, %v724
        %v732 = vrot.slane %v677, 4
        %v733 = vrot.slane %v673, 4
        %v734 = vrot.slane %v678, 4
        %735 = vrot.lane.b32.xlu0 %v732, 112
        %v736 = vpop.permute.xlu0 %735
        %737 = vrot.lane.b32.xlu0 %v733, 112
        %v738 = vpop.permute.xlu0 %737
        %739 = vrot.lane.b32.xlu0 %v734, 112
        %v740 = vpop.permute.xlu0 %739
        %vm741 = vcmask 916480
        %v742 = vsel %vm741, %v736, %v738
        %v743 = vsel %vm741, %v738, %v740
        %746 = vrot.lane.b32.xlu0 %v688, 111
        %v747 = vpop.permute.xlu0 %746
        %748 = vrot.lane.b32.xlu0 %v685, 111
        %v749 = vpop.permute.xlu0 %748
        %750 = vrot.lane.b32.xlu0 %v689, 111
        %v751 = vpop.permute.xlu0 %750
        %vm752 = vcmask 908288
        %v753 = vsel %vm752, %v747, %v749
        %v754 = vsel %vm752, %v749, %v751
        %v757 = vrot.slane %v699, 4
        %v758 = vrot.slane %v696, 4
        %v759 = vrot.slane %v700, 4
        %760 = vrot.lane.b32.xlu0 %v757, 110
        %v761 = vpop.permute.xlu0 %760
        %762 = vrot.lane.b32.xlu0 %v758, 110
        %v763 = vpop.permute.xlu0 %762
        %764 = vrot.lane.b32.xlu0 %v759, 110
        %v765 = vpop.permute.xlu0 %764
        %vm766 = vcmask 900096
        %v767 = vsel %vm766, %v761, %v763
        %v768 = vsel %vm766, %v763, %v765
        %771 = vrot.lane.b32.xlu0 %v677, 96
        %v772 = vpop.permute.xlu0 %771
        %773 = vrot.lane.b32.xlu0 %v673, 96
        %v774 = vpop.permute.xlu0 %773
        %775 = vrot.lane.b32.xlu0 %v678, 96
        %v776 = vpop.permute.xlu0 %775
        %vm777 = vcmask 785408
        %v778 = vsel %vm777, %v772, %v774
        %v779 = vsel %vm777, %v774, %v776
        %782 = vrot.lane.b32.xlu0 %v703, 95
        %v783 = vpop.permute.xlu0 %782
        %784 = vrot.lane.b32.xlu0 %v704, 95
        %v785 = vpop.permute.xlu0 %784
        %786 = vrot.lane.b32.xlu0 %v705, 95
        %v787 = vpop.permute.xlu0 %786
        %vm788 = vcmask 777216
        %v789 = vsel %vm788, %v783, %v785
        %v790 = vsel %vm788, %v785, %v787
        %793 = vrot.lane.b32.xlu0 %v699, 94
        %v794 = vpop.permute.xlu0 %793
        %795 = vrot.lane.b32.xlu0 %v696, 94
        %v796 = vpop.permute.xlu0 %795
        %797 = vrot.lane.b32.xlu0 %v700, 94
        %v798 = vpop.permute.xlu0 %797
        %vm799 = vcmask 769024
        %v800 = vsel %vm799, %v794, %v796
        %v801 = vsel %vm799, %v796, %v798
        %v802 = vsel %vm395, %v677, %v713
        %v803 = vsel %vm395, %v673, %v714
        %v804 = vsel %vm395, %v726, %v742
        %v805 = vsel %vm395, %v727, %v743
        %v806 = vsel %vm395, %v753, %v767
        %v807 = vsel %vm395, %v754, %v768
        %v808 = vsel %vm395, %v778, %v789
        %v809 = vsel %vm395, %v779, %v790
        %v810 = vld [vmem:[%s4] sm:$0xff]
        %v811 = vld [vmem:[%s5] sm:$0xff]
        %813 = vset.pattern.permute.xlu0 0
        %814 = vperm.xlu0 %813, %v811
        %v815 = vpop.permute.xlu0 %814
        %vm817 = vcmask 293888
        %v819 = vsel %vm817, %v810, 0
        %v821 = vsel %vm395, %v800, 0
        %v823 = vsel %vm395, %v801, 0
        %825 = vmatprep.subr.mxu0 %v803
        %826 = vmatpush1.msra.mxu0 %v802
        %827 = vmatprep.subr.mxu0 %v805
        %828 = vmatpush1.msra.mxu0 %v804
        %829 = vmatprep.subr.mxu0 %v807
        %830 = vmatpush1.msra.mxu0 %v806
        %831 = vmatprep.subr.mxu0 %v809
        %832 = vmatpush1.msra.mxu0 %v808
        %833 = vmatprep.subr.mxu0 %v823
        %834 = vmatpush1.msra.mxu0 %v821
        %835 = vmatprep.subr.mxu0 0.0
        %836 = vmatpush1.msra.mxu0 0.0
        %837 = vmatprep.subr.mxu0 0.0
        %838 = vmatpush1.msra.mxu0 0.0
        %839 = vmatprep.subr.mxu0 0.0
        %840 = vmatpush1.msra.mxu0 0.0
        %841 = vmatprep.subr.mxu0 0.0
        %842 = vmatpush1.msra.mxu0 0.0
        %843 = vmatprep.subr.mxu0 0.0
        %844 = vmatpush1.msra.mxu0 0.0
        %845 = vmatprep.subr.mxu0 0.0
        %846 = vmatpush1.msra.mxu0 0.0
        %847 = vmatprep.subr.mxu0 0.0
        %848 = vmatpush1.msra.mxu0 0.0
        %849 = vmatprep.subr.mxu0 0.0
        %850 = vmatpush1.msra.mxu0 0.0
        %851 = vmatprep.subr.mxu0 0.0
        %852 = vmatpush1.msra.mxu0 0.0
        %853 = vmatprep.subr.mxu0 0.0
        %854 = vmatpush1.msra.mxu0 0.0
        %855 = vmatprep.subr.mxu0 0.0
        %856 = vmatpush1.msra.mxu0 0.0
        %857 = vmatprep.subr.mxu0 0.0
        %858 = vmatpush1.msra.mxu0 0.0
        %859 = vmatprep.subr.mxu0 0.0
        %860 = vmatpush1.msra.mxu0 0.0
        %861 = vmatprep.subr.mxu0 0.0
        %862 = vmatpush1.msra.mxu0 0.0
        %863 = vmatprep.subr.mxu0 0.0
        %864 = vmatpush1.msra.mxu0 0.0
        %865 = vmatprep.subr.mxu0 0.0
        %866 = vmatpush1.msra.mxu0 0.0
        %867 = vmatprep.subr.mxu0 0.0
        %868 = vmatpush1.msra.mxu0 0.0
        %869 = vmatprep.subr.mxu0 0.0
        %870 = vmatpush1.msra.mxu0 0.0
        %871 = vmatprep.subr.mxu0 0.0
        %872 = vmatpush1.msra.mxu0 0.0
        %873 = vmatprep.subr.mxu0 0.0
        %874 = vmatpush1.msra.mxu0 0.0
        %875 = vmatprep.subr.mxu0 0.0
        %876 = vmatpush1.msra.mxu0 0.0
        %877 = vmatprep.subr.mxu0 0.0
        %878 = vmatpush1.msra.mxu0 0.0
        %879 = vmatprep.subr.mxu0 0.0
        %880 = vmatpush1.msra.mxu0 0.0
        %881 = vmatprep.subr.mxu0 0.0
        %882 = vmatpush1.msra.mxu0 0.0
        %883 = vmatprep.subr.mxu0 0.0
        %884 = vmatpush1.msra.mxu0 0.0
        %885 = vmatprep.subr.mxu0 0.0
        %886 = vmatpush1.msra.mxu0 0.0
        %887 = vmatprep.subr.mxu0 0.0
        %888 = vmatpush1.msra.mxu0 0.0
        %889 = vmatprep.mubr.f32.mxu0 0.0
        %890 = vmatmul.mubr.f32.gmra.mrb[0].mxu0 %v819
        %v891 = vpop.f32.mrb[0].mxu0
        %v892 = vadd.f32 %v815, %v891
        %v893 = vpop.f32.mrb[0].mxu0
        %v894 = vadd.f32 %v815, %v893
        %895 = vdwg.mxu0
        %v896 = vld [vmem:[%s6] sm:$0xff]
        %v897 = vld [vmem:[%s7] sm:$0xff]
        %v898 = vld [vmem:[%s8] sm:$0xff]
        %vm899 = vcmask 64512
        %v901 = vsel %vm899, %v896, 0
        %903 = vmatprep.subr.mxu0 %v894
        %904 = vmatpush1.msra.mxu0 %v892
        %905 = vmatprep.subr.mxu0 0.0
        %906 = vmatpush1.msra.mxu0 0.0
        %907 = vmatprep.subr.mxu0 0.0
        %908 = vmatpush1.msra.mxu0 0.0
        %909 = vmatprep.subr.mxu0 0.0
        %910 = vmatpush1.msra.mxu0 0.0
        %911 = vmatprep.subr.mxu0 0.0
        %912 = vmatpush1.msra.mxu0 0.0
        %913 = vmatprep.subr.mxu0 0.0
        %914 = vmatpush1.msra.mxu0 0.0
        %915 = vmatprep.subr.mxu0 0.0
        %916 = vmatpush1.msra.mxu0 0.0
        %917 = vmatprep.subr.mxu0 0.0
        %918 = vmatpush1.msra.mxu0 0.0
        %919 = vmatprep.subr.mxu0 0.0
        %920 = vmatpush1.msra.mxu0 0.0
        %921 = vmatprep.subr.mxu0 0.0
        %922 = vmatpush1.msra.mxu0 0.0
        %923 = vmatprep.subr.mxu0 0.0
        %924 = vmatpush1.msra.mxu0 0.0
        %925 = vmatprep.subr.mxu0 0.0
        %926 = vmatpush1.msra.mxu0 0.0
        %927 = vmatprep.subr.mxu0 0.0
        %928 = vmatpush1.msra.mxu0 0.0
        %929 = vmatprep.subr.mxu0 0.0
        %930 = vmatpush1.msra.mxu0 0.0
        %931 = vmatprep.subr.mxu0 0.0
        %932 = vmatpush1.msra.mxu0 0.0
        %933 = vmatprep.subr.mxu0 0.0
        %934 = vmatpush1.msra.mxu0 0.0
        %935 = vmatprep.subr.mxu0 0.0
        %936 = vmatpush1.msra.mxu0 0.0
        %937 = vmatprep.subr.mxu0 0.0
        %938 = vmatpush1.msra.mxu0 0.0
        %939 = vmatprep.subr.mxu0 0.0
        %940 = vmatpush1.msra.mxu0 0.0
        %941 = vmatprep.subr.mxu0 0.0
        %942 = vmatpush1.msra.mxu0 0.0
        %943 = vmatprep.subr.mxu0 0.0
        %944 = vmatpush1.msra.mxu0 0.0
        %945 = vmatprep.subr.mxu0 0.0
        %946 = vmatpush1.msra.mxu0 0.0
        %947 = vmatprep.subr.mxu0 0.0
        %948 = vmatpush1.msra.mxu0 0.0
        %949 = vmatprep.subr.mxu0 0.0
        %950 = vmatpush1.msra.mxu0 0.0
        %951 = vmatprep.subr.mxu0 0.0
        %952 = vmatpush1.msra.mxu0 0.0
        %953 = vmatprep.subr.mxu0 0.0
        %954 = vmatpush1.msra.mxu0 0.0
        %955 = vmatprep.subr.mxu0 0.0
        %956 = vmatpush1.msra.mxu0 0.0
        %957 = vmatprep.subr.mxu0 0.0
        %958 = vmatpush1.msra.mxu0 0.0
        %959 = vmatprep.subr.mxu0 0.0
        %960 = vmatpush1.msra.mxu0 0.0
        %961 = vmatprep.subr.mxu0 0.0
        %962 = vmatpush1.msra.mxu0 0.0
        %963 = vmatprep.subr.mxu0 0.0
        %964 = vmatpush1.msra.mxu0 0.0
        %965 = vmatprep.subr.mxu0 0.0
        %966 = vmatpush1.msra.mxu0 0.0
        %967 = vmatprep.mubr.f32.mxu0 0.0
        %968 = vmatmul.mubr.f32.gmra.mrb[0].mxu0 %v901
        %v969 = vpop.f32.mrb[0].mxu0
        %v970 = vadd.f32 0.0, %v969
        %v971 = vpop.f32.mrb[0].mxu0
        %v972 = vadd.f32 0.0, %v971
        %973 = vdwg.mxu0
        %v974 = vadd.f32 %v970, %v972
        %975 = vadd.xlane.f32.xlu0 %v974
        %v976 = vpop.xlane.xlu0 %975
        %v977 = vmul.f32 %v976, %v476
        %v978 = vsub.f32 %v892, %v977
        %v979 = vsub.f32 %v894, %v977
        %v980 = vmul.f32 %v978, %v978
        %v981 = vmul.f32 %v979, %v979
        %982 = vmatprep.subr.mxu0 %v981
        %983 = vmatpush1.msra.mxu0 %v980
        %984 = vmatprep.subr.mxu0 0.0
        %985 = vmatpush1.msra.mxu0 0.0
        %986 = vmatprep.subr.mxu0 0.0
        %987 = vmatpush1.msra.mxu0 0.0
        %988 = vmatprep.subr.mxu0 0.0
        %989 = vmatpush1.msra.mxu0 0.0
        %990 = vmatprep.subr.mxu0 0.0
        %991 = vmatpush1.msra.mxu0 0.0
        %992 = vmatprep.subr.mxu0 0.0
        %993 = vmatpush1.msra.mxu0 0.0
        %994 = vmatprep.subr.mxu0 0.0
        %995 = vmatpush1.msra.mxu0 0.0
        %996 = vmatprep.subr.mxu0 0.0
        %997 = vmatpush1.msra.mxu0 0.0
        %998 = vmatprep.subr.mxu0 0.0
        %999 = vmatpush1.msra.mxu0 0.0
        %1000 = vmatprep.subr.mxu0 0.0
        %1001 = vmatpush1.msra.mxu0 0.0
        %1002 = vmatprep.subr.mxu0 0.0
        %1003 = vmatpush1.msra.mxu0 0.0
        %1004 = vmatprep.subr.mxu0 0.0
        %1005 = vmatpush1.msra.mxu0 0.0
        %1006 = vmatprep.subr.mxu0 0.0
        %1007 = vmatpush1.msra.mxu0 0.0
        %1008 = vmatprep.subr.mxu0 0.0
        %1009 = vmatpush1.msra.mxu0 0.0
        %1010 = vmatprep.subr.mxu0 0.0
        %1011 = vmatpush1.msra.mxu0 0.0
        %1012 = vmatprep.subr.mxu0 0.0
        %1013 = vmatpush1.msra.mxu0 0.0
        %1014 = vmatprep.subr.mxu0 0.0
        %1015 = vmatpush1.msra.mxu0 0.0
        %1016 = vmatprep.subr.mxu0 0.0
        %1017 = vmatpush1.msra.mxu0 0.0
        %1018 = vmatprep.subr.mxu0 0.0
        %1019 = vmatpush1.msra.mxu0 0.0
        %1020 = vmatprep.subr.mxu0 0.0
        %1021 = vmatpush1.msra.mxu0 0.0
        %1022 = vmatprep.subr.mxu0 0.0
        %1023 = vmatpush1.msra.mxu0 0.0
        %1024 = vmatprep.subr.mxu0 0.0
        %1025 = vmatpush1.msra.mxu0 0.0
        %1026 = vmatprep.subr.mxu0 0.0
        %1027 = vmatpush1.msra.mxu0 0.0
        %1028 = vmatprep.subr.mxu0 0.0
        %1029 = vmatpush1.msra.mxu0 0.0
        %1030 = vmatprep.subr.mxu0 0.0
        %1031 = vmatpush1.msra.mxu0 0.0
        %1032 = vmatprep.subr.mxu0 0.0
        %1033 = vmatpush1.msra.mxu0 0.0
        %1034 = vmatprep.subr.mxu0 0.0
        %1035 = vmatpush1.msra.mxu0 0.0
        %1036 = vmatprep.subr.mxu0 0.0
        %1037 = vmatpush1.msra.mxu0 0.0
        %1038 = vmatprep.subr.mxu0 0.0
        %1039 = vmatpush1.msra.mxu0 0.0
        %1040 = vmatprep.subr.mxu0 0.0
        %1041 = vmatpush1.msra.mxu0 0.0
        %1042 = vmatprep.subr.mxu0 0.0
        %1043 = vmatpush1.msra.mxu0 0.0
        %1044 = vmatprep.subr.mxu0 0.0
        %1045 = vmatpush1.msra.mxu0 0.0
        %1046 = vmatprep.mubr.f32.mxu0 0.0
        %1047 = vmatmul.mubr.f32.gmra.mrb[0].mxu0 %v901
        %v1048 = vpop.f32.mrb[0].mxu0
        %v1049 = vadd.f32 0.0, %v1048
        %v1050 = vpop.f32.mrb[0].mxu0
        %v1051 = vadd.f32 0.0, %v1050
        %1052 = vdwg.mxu0
        %v1053 = vadd.f32 %v1049, %v1051
        %1054 = vadd.xlane.f32.xlu0 %v1053
        %v1055 = vpop.xlane.xlu0 %1054
        %v1056 = vmul.f32 %v1055, %v476
        %v1057 = vadd.f32 %v1056, 1e-05
        %v1058 = vrsqrt.pop %v1057
        %v1059 = vmul.f32 %v978, %v1058
        %v1060 = vmul.f32 %v979, %v1058
        %1062 = vset.pattern.permute.xlu0 0
        %1063 = vperm.xlu0 %1062, %v897
        %v1064 = vpop.permute.xlu0 %1063
        %v1066 = vmul.f32 %v1059, %v1064
        %v1067 = vmul.f32 %v1060, %v1064
        %1069 = vset.pattern.permute.xlu0 0
        %1070 = vperm.xlu0 %1069, %v898
        %v1071 = vpop.permute.xlu0 %1070
        %v1073 = vadd.f32 %v1066, %v1071
        %v1074 = vadd.f32 %v1067, %v1071
        %v1075 = vxor.u32 %v1073, 2147483648
        %v1076 = vxor.u32 %v1074, 2147483648
        %v1077 = vmul.f32 %v1075, 1.442695
        %v1078 = vpow.pop %v1077
        %v1079 = vmul.f32 %v1076, 1.442695
        %v1080 = vpow.pop %v1079
        %v1081 = vadd.f32 %v1078, 1.0
        %v1082 = vadd.f32 %v1080, 1.0
        %v1083 = vrcp.pop %v1081
        %v1084 = vmul.f32 1.0, %v1083
        %v1085 = vrcp.pop %v1082
        %v1086 = vmul.f32 1.0, %v1085
        %v1087 = vmul.f32 %v1073, %v1084
        %v1088 = vmul.f32 %v1074, %v1086
        %v1089 = vmul.f32 %v1087, %v648
        %v1090 = vmul.f32 %v1088, %v649
        %v1091 = vmul.f32 %v1087, %v659
        %v1092 = vmul.f32 %v1088, %v660
        %1095 = vrot.lane.b32.xlu0 %v1089, 17
        %v1096 = vpop.permute.xlu0 %1095
        %1097 = vrot.lane.b32.xlu0 %v1090, 17
        %v1098 = vpop.permute.xlu0 %1097
        %v1099 = vsel %vm672, %v1096, %v1098
        %v1103 = vsel %vm672, 0.0, %v1096
        %v1104 = vsel %vm672, %v1098, 0.0
        %1107 = vrot.lane.b32.xlu0 %v1087, 17
        %v1108 = vpop.permute.xlu0 %1107
        %1109 = vrot.lane.b32.xlu0 %v1088, 17
        %v1110 = vpop.permute.xlu0 %1109
        %v1111 = vsel %vm672, %v1108, %v1110
        %v1114 = vsel %vm672, 0.0, %v1108
        %v1115 = vsel %vm672, %v1110, 0.0
        %1118 = vrot.lane.b32.xlu0 %v1091, 17
        %v1119 = vpop.permute.xlu0 %1118
        %1120 = vrot.lane.b32.xlu0 %v1092, 17
        %v1121 = vpop.permute.xlu0 %1120
        %v1122 = vsel %vm672, %v1119, %v1121
        %v1125 = vsel %vm672, 0.0, %v1119
        %v1126 = vsel %vm672, %v1121, 0.0
        %1129 = vrot.lane.b32.xlu0 %v1114, 127
        %v1130 = vpop.permute.xlu0 %1129
        %1131 = vrot.lane.b32.xlu0 %v1111, 127
        %v1132 = vpop.permute.xlu0 %1131
        %1133 = vrot.lane.b32.xlu0 %v1115, 127
        %v1134 = vpop.permute.xlu0 %1133
        %v1135 = vsel %vm712, %v1130, %v1132
        %v1136 = vsel %vm712, %v1132, %v1134
        %1141 = vrot.lane.b32.xlu0 %v1125, 126
        %v1142 = vpop.permute.xlu0 %1141
        %1143 = vrot.lane.b32.xlu0 %v1122, 126
        %v1144 = vpop.permute.xlu0 %1143
        %1145 = vrot.lane.b32.xlu0 %v1126, 126
        %v1146 = vpop.permute.xlu0 %1145
        %v1147 = vsel %vm725, %v1142, %v1144
        %v1148 = vsel %vm725, %v1144, %v1146
        %1153 = vrot.lane.b32.xlu0 %v1103, 112
        %v1154 = vpop.permute.xlu0 %1153
        %1155 = vrot.lane.b32.xlu0 %v1099, 112
        %v1156 = vpop.permute.xlu0 %1155
        %1157 = vrot.lane.b32.xlu0 %v1104, 112
        %v1158 = vpop.permute.xlu0 %1157
        %v1159 = vsel %vm741, %v1154, %v1156
        %v1160 = vsel %vm741, %v1156, %v1158
        %1163 = vrot.lane.b32.xlu0 %v1114, 111
        %v1164 = vpop.permute.xlu0 %1163
        %1165 = vrot.lane.b32.xlu0 %v1111, 111
        %v1166 = vpop.permute.xlu0 %1165
        %1167 = vrot.lane.b32.xlu0 %v1115, 111
        %v1168 = vpop.permute.xlu0 %1167
        %v1169 = vsel %vm752, %v1164, %v1166
        %v1170 = vsel %vm752, %v1166, %v1168
        %1173 = vrot.lane.b32.xlu0 %v1125, 110
        %v1174 = vpop.permute.xlu0 %1173
        %1175 = vrot.lane.b32.xlu0 %v1122, 110
        %v1176 = vpop.permute.xlu0 %1175
        %1177 = vrot.lane.b32.xlu0 %v1126, 110
        %v1178 = vpop.permute.xlu0 %1177
        %v1179 = vsel %vm766, %v1174, %v1176
        %v1180 = vsel %vm766, %v1176, %v1178
        %1183 = vrot.lane.b32.xlu0 %v1103, 96
        %v1184 = vpop.permute.xlu0 %1183
        %1185 = vrot.lane.b32.xlu0 %v1099, 96
        %v1186 = vpop.permute.xlu0 %1185
        %1187 = vrot.lane.b32.xlu0 %v1104, 96
        %v1188 = vpop.permute.xlu0 %1187
        %v1189 = vsel %vm777, %v1184, %v1186
        %v1190 = vsel %vm777, %v1186, %v1188
        %1193 = vrot.lane.b32.xlu0 %v1114, 95
        %v1194 = vpop.permute.xlu0 %1193
        %1195 = vrot.lane.b32.xlu0 %v1111, 95
        %v1196 = vpop.permute.xlu0 %1195
        %1197 = vrot.lane.b32.xlu0 %v1115, 95
        %v1198 = vpop.permute.xlu0 %1197
        %v1199 = vsel %vm788, %v1194, %v1196
        %v1200 = vsel %vm788, %v1196, %v1198
        %1203 = vrot.lane.b32.xlu0 %v1125, 94
        %v1204 = vpop.permute.xlu0 %1203
        %1205 = vrot.lane.b32.xlu0 %v1122, 94
        %v1206 = vpop.permute.xlu0 %1205
        %1207 = vrot.lane.b32.xlu0 %v1126, 94
        %v1208 = vpop.permute.xlu0 %1207
        %v1209 = vsel %vm799, %v1204, %v1206
        %v1210 = vsel %vm799, %v1206, %v1208
        %v1213 = vld [vmem:[%s9] sm:$0xff]
        %v1214 = vld [vmem:[%s10] sm:$0xff]
        %1216 = vset.pattern.permute.xlu0 0
        %1217 = vperm.xlu0 %1216, %v1214
        %v1218 = vpop.permute.xlu0 %1217
        %vm1220 = vcmask 621568
        %v1222 = vsel %vm1220, %v1213, 0
        %1224 = vmatprep.subr.mxu0 %v1099
        %1225 = vmatpush1.msra.mxu0 %v1103
        %1226 = vmatprep.subr.mxu0 %v1136
        %1227 = vmatpush1.msra.mxu0 %v1135
        %1228 = vmatprep.subr.mxu0 %v1148
        %1229 = vmatpush1.msra.mxu0 %v1147
        %1230 = vmatprep.subr.mxu0 %v1160
        %1231 = vmatpush1.msra.mxu0 %v1159
        %1232 = vmatprep.subr.mxu0 %v1170
        %1233 = vmatpush1.msra.mxu0 %v1169
        %1234 = vmatprep.subr.mxu0 %v1180
        %1235 = vmatpush1.msra.mxu0 %v1179
        %1236 = vmatprep.subr.mxu0 %v1190
        %1237 = vmatpush1.msra.mxu0 %v1189
        %1238 = vmatprep.subr.mxu0 %v1200
        %1239 = vmatpush1.msra.mxu0 %v1199
        %1240 = vmatprep.subr.mxu0 %v1210
        %1241 = vmatpush1.msra.mxu0 %v1209
        %1242 = vmatprep.subr.mxu0 %v398
        %1243 = vmatpush1.msra.mxu0 %v396
        %1244 = vmatprep.subr.mxu0 0.0
        %1245 = vmatpush1.msra.mxu0 0.0
        %1246 = vmatprep.subr.mxu0 0.0
        %1247 = vmatpush1.msra.mxu0 0.0
        %1248 = vmatprep.subr.mxu0 0.0
        %1249 = vmatpush1.msra.mxu0 0.0
        %1250 = vmatprep.subr.mxu0 0.0
        %1251 = vmatpush1.msra.mxu0 0.0
        %1252 = vmatprep.subr.mxu0 0.0
        %1253 = vmatpush1.msra.mxu0 0.0
        %1254 = vmatprep.subr.mxu0 0.0
        %1255 = vmatpush1.msra.mxu0 0.0
        %1256 = vmatprep.subr.mxu0 0.0
        %1257 = vmatpush1.msra.mxu0 0.0
        %1258 = vmatprep.subr.mxu0 0.0
        %1259 = vmatpush1.msra.mxu0 0.0
        %1260 = vmatprep.subr.mxu0 0.0
        %1261 = vmatpush1.msra.mxu0 0.0
        %1262 = vmatprep.subr.mxu0 0.0
        %1263 = vmatpush1.msra.mxu0 0.0
        %1264 = vmatprep.subr.mxu0 0.0
        %1265 = vmatpush1.msra.mxu0 0.0
        %1266 = vmatprep.subr.mxu0 0.0
        %1267 = vmatpush1.msra.mxu0 0.0
        %1268 = vmatprep.subr.mxu0 0.0
        %1269 = vmatpush1.msra.mxu0 0.0
        %1270 = vmatprep.subr.mxu0 0.0
        %1271 = vmatpush1.msra.mxu0 0.0
        %1272 = vmatprep.subr.mxu0 0.0
        %1273 = vmatpush1.msra.mxu0 0.0
        %1274 = vmatprep.subr.mxu0 0.0
        %1275 = vmatpush1.msra.mxu0 0.0
        %1276 = vmatprep.subr.mxu0 0.0
        %1277 = vmatpush1.msra.mxu0 0.0
        %1278 = vmatprep.subr.mxu0 0.0
        %1279 = vmatpush1.msra.mxu0 0.0
        %1280 = vmatprep.subr.mxu0 0.0
        %1281 = vmatpush1.msra.mxu0 0.0
        %1282 = vmatprep.subr.mxu0 0.0
        %1283 = vmatpush1.msra.mxu0 0.0
        %1284 = vmatprep.subr.mxu0 0.0
        %1285 = vmatpush1.msra.mxu0 0.0
        %1286 = vmatprep.subr.mxu0 0.0
        %1287 = vmatpush1.msra.mxu0 0.0
        %1288 = vmatprep.mubr.f32.mxu0 0.0
        %1289 = vmatmul.mubr.f32.gmra.mrb[0].mxu0 %v1222
        %v1290 = vpop.f32.mrb[0].mxu0
        %v1291 = vadd.f32 %v1218, %v1290
        %v1292 = vpop.f32.mrb[0].mxu0
        %v1293 = vadd.f32 %v1218, %v1292
        %1294 = vdwg.mxu0
        %1295 = vst [vmem:[%s379] sm:$0xff] %v1291
        %1296 = vst [vmem:[%s379 + $0x8] sm:$0xff] %v1293
        %s1297 = sand.u32 %s269, 1
        %s1298 = scalar_lea.sflag [#allocation3], %s1297
        %s1299 = sand.u32 %s269, 1
        %s1300 = smul.addr %s1299, 16
        %s1301 = scalar_lea.vmem [#allocation2], %s1300
        // Predicated region
        $region65: #{tpu_custom_call.1} parent=63 // pred_check
          %p1302 = pneg %p279
        $region66: #{tpu_custom_call.1} parent=63 // pred_check_branch
          %1304 = sbr.rel (%p1302) target = $region68
        $region67: #{tpu_custom_call.1} parent=63 // pred_region
          %s1306 = ssub.s32 256, 256
          %1307 = vsyncadd %s1298, %s1306
          %s1308 = smul.addr %s25, 2
          %s1309 = smul.addr %s1308, 128
          %s1310 = scalar_lea.hbm %s11, %s1309
          %s1312 = sshll.u32 %s1301, 4
          %s1313 = int_to_ptr.vmem [resolvable:$true] %s1312
          %1315 = dma.vmem_to_hbm [thread:$0]  %s1313, 256, %s1310, %s1298
        $region68: #{tpu_custom_call.1} parent=63 // pred_fallthru
          _
      $region64: #{tpu_custom_call.1} parent=5 // pred_fallthru
        _
      %p1316 = scmp.le.s32.totalorder 2, %s20
      // Predicated region
      $region69: #{tpu_custom_call.1} parent=5 // pred_check
        %p1317 = pneg %p1316
      $region70: #{tpu_custom_call.1} parent=5 // pred_check_branch
        %1319 = sbr.rel (%p1317) target = $region72
      $region71: #{tpu_custom_call.1} parent=5 // pred_region
        %s1320 = ssub.s32 %s20, 2
        // Predicated region
        $region73: #{tpu_custom_call.1} parent=71 // pred_check
          %p1321 = pneg %p285
        $region74: #{tpu_custom_call.1} parent=71 // pred_check_branch
          %1323 = sbr.rel (%p1321) target = $region76
        $region75: #{tpu_custom_call.1} parent=71 // pred_region
          %s1324 = sand.u32 %s270, 1
          %s1325 = scalar_lea.sflag [#allocation3], %s1324
          %s1326 = sand.u32 %s270, 1
          %s1327 = smul.addr %s1326, 16
          %s1328 = scalar_lea.vmem [#allocation2], %s1327
          %1329 = dma.done %s1325, 256
        $region76: #{tpu_custom_call.1} parent=71 // pred_fallthru
          _
      $region72: #{tpu_custom_call.1} parent=5 // pred_fallthru
        _
    $region6: #{tpu_custom_call.1} parent=1 // loop_footer
      %s24 = sadd.s32 1, %s20
    $region7: #{tpu_custom_call.1} parent=1 // loop_footer_branch
      %19 = sbr.rel target = $region3
    $region8: #{tpu_custom_call.1} parent=1 // loop_exit
      _
    %1330 = vsyncpa [#allocation3], 1
    %s1331 = scalar_lea.sflag [#allocation3], 1
    %1332 = vsyncpa %s1331, 1

</llo_original>
